<compile_context>
chip_gen: v6e
topology: v6e:2x2x1
jax: 0.10.0
libtpu: 0.0.40
codegen_flags: <defaults>
</compile_context>

<pallas_src>
import numpy as np
import jax
import jax.numpy as jnp
from jax.experimental import pallas as pl
from jax.experimental.pallas import tpu as pltpu

LAMBDA_AMP = 1.0
LAMBDA_PHASE = 0.5
LAMBDA_SSIM = 0.2
LAMBDA_GRAD = 0.1


# ----------------------------- operator matrices -----------------------------
def _same_conv_band(n, taps):
  """'same' (padding=1) cross-correlation band matrix for a length-3 tap."""
  m = np.zeros((n, n), np.float32)
  for i in range(n):
    for t, v in enumerate(taps):
      j = i + t - 1
      if 0 <= j < n:
        m[i, j] = v
  return m


def _valid_conv_band(n, taps):
  """valid (no-pad) cross-correlation band matrix, output length n-len(taps)+1."""
  k = len(taps)
  m = np.zeros((n - k + 1, n), np.float32)
  for i in range(n - k + 1):
    m[i, i:i + k] = taps
  return m


def _haar_sum(n):
  """(n//2, n) matrix summing adjacent pairs (2x2-block sum along one axis)."""
  m = np.zeros((n // 2, n), np.float32)
  for i in range(n // 2):
    m[i, 2 * i] = 1.0
    m[i, 2 * i + 1] = 1.0
  return m


def _dft_mats(n):
  """cos/sin DFT matrices: F = C - i*S with C[k,m]=cos(2pi k m/n) (symmetric)."""
  k = np.arange(n, dtype=np.float64)[:, None]
  m = np.arange(n, dtype=np.float64)[None, :]
  ang = 2.0 * np.pi * k * m / n
  return np.cos(ang).astype(np.float32), np.sin(ang).astype(np.float32)


def _gaussian_1d(size=11, sigma=1.5):
  x = np.arange(size, dtype=np.float64) - size // 2
  g = np.exp(-(x ** 2) / (2.0 * sigma ** 2))
  return (g / g.sum()).astype(np.float32)


def _block_diag(m, g):
  """Block-diagonal repetition of a (r, c) operator -> (g*r, g*c)."""
  return np.kron(np.eye(g, dtype=np.float32), m.astype(np.float32))


def _largest_packing(n_images, w, lane_budget=128):
  """Largest divisor G of n_images with G*w <= lane_budget (>= 1)."""
  g_max = max(1, lane_budget // max(w, 1))
  g = 1
  for cand in range(1, min(g_max, n_images) + 1):
    if n_images % cand == 0:
      g = cand
  return g


# --------------------------------- the kernel --------------------------------
def _cfdn_loss_kernel(pred_ref, tgt_ref, fr_ref, fi_ref,
                      dh_ref, dwt_ref, ch_ref, sh_ref, cw_ref, sw_ref,
                      gr_ref, gct_ref, rsm_ref, rdf_ref, csmt_ref, cdft_ref,
                      out_ref):
  pred_raw = pred_ref[0]            # (H, G*W)  packed raw [-1, 1] images
  tgt_raw = tgt_ref[0]
  fr = fr_ref[0]                    # (H/2, G*W/2)
  fi = fi_ref[0]

  def mm(a, b):
    # f32 operands, f32 accumulation, default MXU precision.
    # Documented alternatives: precision=jax.lax.Precision.HIGHEST for exact
    # fp32 parity with torch, or bf16 operands for v5e/v6e MXU rate.
    return jnp.dot(a, b, preferred_element_type=jnp.float32)

  def sep(a, x, bt):                # A @ X @ B^T via two 2-D MXU matmuls
    return mm(a, mm(x, bt))

  def sum_all(x):                   # (r, c) -> (1, 1) partial sum
    return jnp.sum(jnp.sum(x, axis=1, keepdims=True), axis=0, keepdims=True)

  pred = (pred_raw + 1.0) * 0.5
  target = (tgt_raw + 1.0) * 0.5
  diff = pred - target

  # ----- Haar LL of the raw target, then its 2-D DFT (packed matmuls) -----
  ll = sep(dh_ref[...], tgt_raw, dwt_ref[...])          # (H/2, G*W/2), scale in dh
  p = mm(ch_ref[...], ll)
  q = mm(sh_ref[...], ll)
  cw = cw_ref[...]
  sw = sw_ref[...]
  real_t = mm(p, cw) - mm(q, sw)
  imag_t = -(mm(p, sw) + mm(q, cw))

  # ----- amplitude loss (partial sum) -----
  amp_opt = jnp.sqrt(fr * fr + fi * fi + 1e-8)
  amp_tgt = jnp.sqrt(real_t * real_t + imag_t * imag_t + 1e-8)
  s_amp = sum_all(jnp.abs(amp_opt - amp_tgt))

  # ----- phase loss: 1 - cos(atan2 diff) via the exact identity -----
  xo = fr + 1e-8
  yo = fi
  xt = real_t + 1e-8
  yt = imag_t
  ro = jnp.sqrt(xo * xo + yo * yo)
  rt = jnp.sqrt(xt * xt + yt * yt)
  cosd = (xo * xt + yo * yt) / (ro * rt)
  s_phase = sum_all(1.0 - cosd)

  # ----- L1 loss on [0,1]-rescaled images -----
  s_l1 = sum_all(jnp.abs(diff))

  # ----- SSIM (11x11 Gaussian, sigma=1.5, valid padding, data_range=1) -----
  gr = gr_ref[...]
  gct = gct_ref[...]
  mu1 = sep(gr, pred, gct)
  mu2 = sep(gr, target, gct)
  s1 = sep(gr, pred * pred, gct) - mu1 * mu1
  s2 = sep(gr, target * target, gct) - mu2 * mu2
  s12 = sep(gr, pred * target, gct) - mu1 * mu2
  c1 = (0.01 * 1.0) ** 2
  c2 = (0.03 * 1.0) ** 2
  num = (2.0 * mu1 * mu2 + c1) * (2.0 * s12 + c2)
  den = (mu1 * mu1 + mu2 * mu2 + c1) * (s1 + s2 + c2)
  ssim_map = num / den              # exact division (pytorch_msssim parity)
  s_ssim = sum_all(ssim_map)

  # ----- Sobel gradient loss on the difference image (Sobel is linear) -----
  gx = sep(rsm_ref[...], diff, cdft_ref[...])
  gy = sep(rdf_ref[...], diff, csmt_ref[...])
  s_grad = sum_all(jnp.abs(gx) + jnp.abs(gy))           # fused gx+gy reduction

  # ----- one lane-dense (1, 128) row of partial sums per packed chunk -----
  lane = jax.lax.broadcasted_iota(jnp.int32, (1, 128), 1)
  row = (jnp.where(lane == 0, s_l1, 0.0)
         + jnp.where(lane == 1, s_amp, 0.0)
         + jnp.where(lane == 2, s_phase, 0.0)
         + jnp.where(lane == 3, s_ssim, 0.0)
         + jnp.where(lane == 4, s_grad, 0.0))
  out_ref[...] = row.reshape(1, 1, 128)


# --------------------------------- wrapper -----------------------------------
@jax.jit
def cfdn_loss(pred_img, target_img, fft_real_opt, fft_imag_opt):
  B, C, H, W = pred_img.shape
  H2, W2 = H // 2, W // 2
  N = B * C
  win = 11
  Hv, Wv = H - win + 1, W - win + 1

  # ---- lane packing: G images side-by-side along the lane (W) axis ----
  G = _largest_packing(N, W, lane_budget=128)
  Ng = N // G
  GW, GW2, GWv = G * W, G * W2, G * Wv

  def pack(x, h, w):
    x = x.reshape(Ng, G, h, w).astype(jnp.float32)
    return x.transpose(0, 2, 1, 3).reshape(Ng, h, G * w)

  pred = pack(pred_img.reshape(N, H, W), H, W)
  tgt = pack(target_img.reshape(N, H, W), H, W)
  fr = pack(fft_real_opt.reshape(N, H2, W2), H2, W2)
  fi = pack(fft_imag_opt.reshape(N, H2, W2), H2, W2)

  # Trace-time constant operator matrices.  Left-hand operators apply to the
  # packed slab unchanged; right-hand operators are pre-transposed and made
  # block-diagonal over G so packed images never mix (per-image padding).
  ch, sh = _dft_mats(H2)                                      # (H2, H2), symmetric
  cwm, swm = _dft_mats(W2)                                    # (W2, W2), symmetric
  g1d = _gaussian_1d(win, 1.5)
  gr = _valid_conv_band(H, g1d)                               # (Hv, H)
  rsm = _same_conv_band(H, [1.0, 2.0, 1.0])                   # (H, H)
  rdf = _same_conv_band(H, [-1.0, 0.0, 1.0])                  # (H, H)
  dh = (0.5 * _haar_sum(H)).astype(np.float32)                # (H2, H), LL scale folded in

  dwt = _block_diag(_haar_sum(W).T, G)                        # (GW, GW2)
  cw = _block_diag(cwm, G)                                    # (GW2, GW2)
  sw = _block_diag(swm, G)                                    # (GW2, GW2)
  gct = _block_diag(_valid_conv_band(W, g1d).T, G)            # (GW, GWv)
  csmt = _block_diag(_same_conv_band(W, [1.0, 2.0, 1.0]).T, G)   # (GW, GW)
  cdft = _block_diag(_same_conv_band(W, [-1.0, 0.0, 1.0]).T, G)  # (GW, GW)

  img_spec = pl.BlockSpec((1, H, GW), lambda i: (i, 0, 0))
  fft_spec = pl.BlockSpec((1, H2, GW2), lambda i: (i, 0, 0))

  def op_spec(shape):
    # Constant index_map -> operator fetched once and VMEM-resident across the
    # grid.  TODO(synk): pipeline_mode=pl.Buffered(1) would also drop the idle
    # second buffer of these constants for very large H, W.
    return pl.BlockSpec(shape, lambda i: (0, 0))

  grid_spec = pltpu.PrefetchScalarGridSpec(
      num_scalar_prefetch=0,
      grid=(Ng,),
      in_specs=[
          img_spec, img_spec, fft_spec, fft_spec,
          op_spec((H2, H)), op_spec((GW, GW2)),
          op_spec((H2, H2)), op_spec((H2, H2)),
          op_spec((GW2, GW2)), op_spec((GW2, GW2)),
          op_spec((Hv, H)), op_spec((GW, GWv)),
          op_spec((H, H)), op_spec((H, H)),
          op_spec((GW, GW)), op_spec((GW, GW)),
      ],
      out_specs=pl.BlockSpec((1, 1, 128), lambda i: (i, 0, 0)),
  )

  partials = pl.pallas_call(
      _cfdn_loss_kernel,
      out_shape=jax.ShapeDtypeStruct((Ng, 1, 128), jnp.float32),
      grid_spec=grid_spec,
      compiler_params=pltpu.CompilerParams(
          dimension_semantics=("parallel",),          # v7x: shard chunks over 2 TCs
          vmem_limit_bytes=48 * 1024 * 1024),          # above 16/32 MiB defaults, below v7x 64 MiB
  )(pred, tgt, fr, fi,
    dh, dwt, ch, sh, cw, sw, gr, gct, rsm, rdf, csmt, cdft)

  sums = jnp.sum(partials[:, 0, :], axis=0)            # (128,) total partial sums
  n = float(N)
  n_img = n * H * W
  n_fft = n * H2 * W2
  n_ssim = n * Hv * Wv

  loss_l1 = sums[0] / n_img
  loss_amp = sums[1] / n_fft
  loss_phase = sums[2] / n_fft
  loss_ssim = 1.0 - sums[3] / n_ssim
  loss_grad = sums[4] / (2.0 * n_img)

  total = (loss_l1
           + LAMBDA_AMP * loss_amp
           + LAMBDA_PHASE * loss_phase
           + LAMBDA_SSIM * loss_ssim
           + LAMBDA_GRAD * loss_grad)
  return {'total': total, 'loss_l1': loss_l1, 'loss_amp': loss_amp,
          'loss_phase': loss_phase, 'loss_ssim': loss_ssim,
          'loss_grad': loss_grad}


if __name__ == "__main__":
  key = jax.random.PRNGKey(0)
  k1, k2, k3, k4 = jax.random.split(key, 4)
  B, C, H, W = 2, 3, 16, 16            # SSIM(channel=3) implies C=3; H, W >= 11 and even
  pred_img = jax.random.uniform(k1, (B, C, H, W), jnp.float32, -1.0, 1.0)
  target_img = jax.random.uniform(k2, (B, C, H, W), jnp.float32, -1.0, 1.0)
  fft_real_opt = jax.random.normal(k3, (B, C, H // 2, W // 2), jnp.float32)
  fft_imag_opt = jax.random.normal(k4, (B, C, H // 2, W // 2), jnp.float32)

  out = cfdn_loss(pred_img, target_img, fft_real_opt, fft_imag_opt)
  jax.block_until_ready(out)
  print("KERNEL_OK")
</pallas_src>

<mosaic_0001>
module attributes {stable_mosaic.version = 11 : i64} {
  func.func @_cfdn_loss_kernel(%arg0: i32, %arg1: memref<1x16x96xf32, #tpu.memory_space<vmem>>, %arg2: memref<1x16x96xf32, #tpu.memory_space<vmem>>, %arg3: memref<1x8x48xf32, #tpu.memory_space<vmem>>, %arg4: memref<1x8x48xf32, #tpu.memory_space<vmem>>, %arg5: memref<8x16xf32, #tpu.memory_space<vmem>>, %arg6: memref<96x48xf32, #tpu.memory_space<vmem>>, %arg7: memref<8x8xf32, #tpu.memory_space<vmem>>, %arg8: memref<8x8xf32, #tpu.memory_space<vmem>>, %arg9: memref<48x48xf32, #tpu.memory_space<vmem>>, %arg10: memref<48x48xf32, #tpu.memory_space<vmem>>, %arg11: memref<6x16xf32, #tpu.memory_space<vmem>>, %arg12: memref<96x36xf32, #tpu.memory_space<vmem>>, %arg13: memref<16x16xf32, #tpu.memory_space<vmem>>, %arg14: memref<16x16xf32, #tpu.memory_space<vmem>>, %arg15: memref<96x96xf32, #tpu.memory_space<vmem>>, %arg16: memref<96x96xf32, #tpu.memory_space<vmem>>, %arg17: memref<1x1x128xf32, #tpu.memory_space<vmem>>) attributes {dimension_semantics = [#tpu.dimension_semantics<parallel>], iteration_bounds = array<i64: 1>, scalar_prefetch = 0 : i64, scratch_operands = 0 : i64, tpu.core_type = #tpu.core_type<tc>, window_params = [{transform_indices = @transform_0, window_bounds = array<i64: 1, 16, 96>}, {transform_indices = @transform_1, window_bounds = array<i64: 1, 16, 96>}, {transform_indices = @transform_2, window_bounds = array<i64: 1, 8, 48>}, {transform_indices = @transform_3, window_bounds = array<i64: 1, 8, 48>}, {pipeline_mode = #tpu.pipeline_mode<synchronous>, transform_indices = @transform_4, window_bounds = array<i64: 8, 16>}, {pipeline_mode = #tpu.pipeline_mode<synchronous>, transform_indices = @transform_5, window_bounds = array<i64: 96, 48>}, {pipeline_mode = #tpu.pipeline_mode<synchronous>, transform_indices = @transform_6, window_bounds = array<i64: 8, 8>}, {pipeline_mode = #tpu.pipeline_mode<synchronous>, transform_indices = @transform_7, window_bounds = array<i64: 8, 8>}, {pipeline_mode = #tpu.pipeline_mode<synchronous>, transform_indices = @transform_8, window_bounds = array<i64: 48, 48>}, {pipeline_mode = #tpu.pipeline_mode<synchronous>, transform_indices = @transform_9, window_bounds = array<i64: 48, 48>}, {pipeline_mode = #tpu.pipeline_mode<synchronous>, transform_indices = @transform_10, window_bounds = array<i64: 6, 16>}, {pipeline_mode = #tpu.pipeline_mode<synchronous>, transform_indices = @transform_11, window_bounds = array<i64: 96, 36>}, {pipeline_mode = #tpu.pipeline_mode<synchronous>, transform_indices = @transform_12, window_bounds = array<i64: 16, 16>}, {pipeline_mode = #tpu.pipeline_mode<synchronous>, transform_indices = @transform_13, window_bounds = array<i64: 16, 16>}, {pipeline_mode = #tpu.pipeline_mode<synchronous>, transform_indices = @transform_14, window_bounds = array<i64: 96, 96>}, {pipeline_mode = #tpu.pipeline_mode<synchronous>, transform_indices = @transform_15, window_bounds = array<i64: 96, 96>}, {transform_indices = @transform_16, window_bounds = array<i64: 1, 1, 128>}]} {
    %c0 = arith.constant 0 : index
    %c0_0 = arith.constant 0 : index
    %c0_1 = arith.constant 0 : index
    %0 = vector.load %arg1[%c0, %c0_0, %c0_1] : memref<1x16x96xf32, #tpu.memory_space<vmem>>, vector<1x16x96xf32>
    %1 = vector.shape_cast %0 : vector<1x16x96xf32> to vector<16x96xf32>
    %c0_2 = arith.constant 0 : index
    %c0_3 = arith.constant 0 : index
    %c0_4 = arith.constant 0 : index
    %2 = vector.load %arg2[%c0_2, %c0_3, %c0_4] : memref<1x16x96xf32, #tpu.memory_space<vmem>>, vector<1x16x96xf32>
    %3 = vector.shape_cast %2 : vector<1x16x96xf32> to vector<16x96xf32>
    %c0_5 = arith.constant 0 : index
    %c0_6 = arith.constant 0 : index
    %c0_7 = arith.constant 0 : index
    %4 = vector.load %arg3[%c0_5, %c0_6, %c0_7] : memref<1x8x48xf32, #tpu.memory_space<vmem>>, vector<1x8x48xf32>
    %5 = vector.shape_cast %4 : vector<1x8x48xf32> to vector<8x48xf32>
    %c0_8 = arith.constant 0 : index
    %c0_9 = arith.constant 0 : index
    %c0_10 = arith.constant 0 : index
    %6 = vector.load %arg4[%c0_8, %c0_9, %c0_10] : memref<1x8x48xf32, #tpu.memory_space<vmem>>, vector<1x8x48xf32>
    %7 = vector.shape_cast %6 : vector<1x8x48xf32> to vector<8x48xf32>
    %cst = arith.constant 1.000000e+00 : f32
    %8 = vector.broadcast %cst : f32 to vector<16x96xf32>
    %9 = arith.addf %1, %8 : vector<16x96xf32>
    %cst_11 = arith.constant 5.000000e-01 : f32
    %10 = vector.broadcast %cst_11 : f32 to vector<16x96xf32>
    %11 = arith.mulf %9, %10 : vector<16x96xf32>
    %cst_12 = arith.constant 1.000000e+00 : f32
    %12 = vector.broadcast %cst_12 : f32 to vector<16x96xf32>
    %13 = arith.addf %3, %12 : vector<16x96xf32>
    %cst_13 = arith.constant 5.000000e-01 : f32
    %14 = vector.broadcast %cst_13 : f32 to vector<16x96xf32>
    %15 = arith.mulf %13, %14 : vector<16x96xf32>
    %16 = arith.subf %11, %15 : vector<16x96xf32>
    %c0_14 = arith.constant 0 : index
    %c0_15 = arith.constant 0 : index
    %17 = vector.load %arg5[%c0_14, %c0_15] : memref<8x16xf32, #tpu.memory_space<vmem>>, vector<8x16xf32>
    %c0_16 = arith.constant 0 : index
    %c0_17 = arith.constant 0 : index
    %18 = vector.load %arg6[%c0_16, %c0_17] : memref<96x48xf32, #tpu.memory_space<vmem>>, vector<96x48xf32>
    %cst_18 = arith.constant dense<0.000000e+00> : vector<16x48xf32>
    %19 = tpu.matmul %3, %18, %cst_18 {dimension_numbers = #tpu.dot_dimension_numbers<[1], [0], [0], [1], [0, 0, 1, 1], [], []>} : vector<16x96xf32>, vector<96x48xf32>, vector<16x48xf32> -> vector<16x48xf32>
    %cst_19 = arith.constant dense<0.000000e+00> : vector<8x48xf32>
    %20 = tpu.matmul %17, %19, %cst_19 {dimension_numbers = #tpu.dot_dimension_numbers<[1], [0], [0], [1], [0, 0, 1, 1], [], []>} : vector<8x16xf32>, vector<16x48xf32>, vector<8x48xf32> -> vector<8x48xf32>
    %c0_20 = arith.constant 0 : index
    %c0_21 = arith.constant 0 : index
    %21 = vector.load %arg7[%c0_20, %c0_21] : memref<8x8xf32, #tpu.memory_space<vmem>>, vector<8x8xf32>
    %cst_22 = arith.constant dense<0.000000e+00> : vector<8x48xf32>
    %22 = tpu.matmul %21, %20, %cst_22 {dimension_numbers = #tpu.dot_dimension_numbers<[1], [0], [0], [1], [0, 0, 1, 1], [], []>} : vector<8x8xf32>, vector<8x48xf32>, vector<8x48xf32> -> vector<8x48xf32>
    %c0_23 = arith.constant 0 : index
    %c0_24 = arith.constant 0 : index
    %23 = vector.load %arg8[%c0_23, %c0_24] : memref<8x8xf32, #tpu.memory_space<vmem>>, vector<8x8xf32>
    %cst_25 = arith.constant dense<0.000000e+00> : vector<8x48xf32>
    %24 = tpu.matmul %23, %20, %cst_25 {dimension_numbers = #tpu.dot_dimension_numbers<[1], [0], [0], [1], [0, 0, 1, 1], [], []>} : vector<8x8xf32>, vector<8x48xf32>, vector<8x48xf32> -> vector<8x48xf32>
    %c0_26 = arith.constant 0 : index
    %c0_27 = arith.constant 0 : index
    %25 = vector.load %arg9[%c0_26, %c0_27] : memref<48x48xf32, #tpu.memory_space<vmem>>, vector<48x48xf32>
    %c0_28 = arith.constant 0 : index
    %c0_29 = arith.constant 0 : index
    %26 = vector.load %arg10[%c0_28, %c0_29] : memref<48x48xf32, #tpu.memory_space<vmem>>, vector<48x48xf32>
    %cst_30 = arith.constant dense<0.000000e+00> : vector<8x48xf32>
    %27 = tpu.matmul %22, %25, %cst_30 {dimension_numbers = #tpu.dot_dimension_numbers<[1], [0], [0], [1], [0, 0, 1, 1], [], []>} : vector<8x48xf32>, vector<48x48xf32>, vector<8x48xf32> -> vector<8x48xf32>
    %cst_31 = arith.constant dense<0.000000e+00> : vector<8x48xf32>
    %28 = tpu.matmul %24, %26, %cst_31 {dimension_numbers = #tpu.dot_dimension_numbers<[1], [0], [0], [1], [0, 0, 1, 1], [], []>} : vector<8x48xf32>, vector<48x48xf32>, vector<8x48xf32> -> vector<8x48xf32>
    %29 = arith.subf %27, %28 : vector<8x48xf32>
    %cst_32 = arith.constant dense<0.000000e+00> : vector<8x48xf32>
    %30 = tpu.matmul %22, %26, %cst_32 {dimension_numbers = #tpu.dot_dimension_numbers<[1], [0], [0], [1], [0, 0, 1, 1], [], []>} : vector<8x48xf32>, vector<48x48xf32>, vector<8x48xf32> -> vector<8x48xf32>
    %cst_33 = arith.constant dense<0.000000e+00> : vector<8x48xf32>
    %31 = tpu.matmul %24, %25, %cst_33 {dimension_numbers = #tpu.dot_dimension_numbers<[1], [0], [0], [1], [0, 0, 1, 1], [], []>} : vector<8x48xf32>, vector<48x48xf32>, vector<8x48xf32> -> vector<8x48xf32>
    %32 = arith.addf %30, %31 : vector<8x48xf32>
    %cst_34 = arith.constant 0.000000e+00 : f32
    %33 = vector.broadcast %cst_34 : f32 to vector<8x48xf32>
    %34 = arith.subf %33, %32 : vector<8x48xf32>
    %35 = arith.mulf %5, %5 : vector<8x48xf32>
    %36 = arith.mulf %7, %7 : vector<8x48xf32>
    %37 = arith.addf %35, %36 : vector<8x48xf32>
    %cst_35 = arith.constant 9.99999993E-9 : f32
    %38 = vector.broadcast %cst_35 : f32 to vector<8x48xf32>
    %39 = arith.addf %37, %38 : vector<8x48xf32>
    %40 = math.sqrt %39 : vector<8x48xf32>
    %41 = arith.mulf %29, %29 : vector<8x48xf32>
    %42 = arith.mulf %34, %34 : vector<8x48xf32>
    %43 = arith.addf %41, %42 : vector<8x48xf32>
    %cst_36 = arith.constant 9.99999993E-9 : f32
    %44 = vector.broadcast %cst_36 : f32 to vector<8x48xf32>
    %45 = arith.addf %43, %44 : vector<8x48xf32>
    %46 = math.sqrt %45 : vector<8x48xf32>
    %47 = arith.subf %40, %46 : vector<8x48xf32>
    %48 = math.absf %47 : vector<8x48xf32>
    %cst_37 = arith.constant dense<0.000000e+00> : vector<8xf32>
    %49 = vector.multi_reduction <add>, %48, %cst_37 [1] : vector<8x48xf32> to vector<8xf32>
    %50 = vector.shape_cast %49 : vector<8xf32> to vector<8x1xf32>
    %cst_38 = arith.constant dense<0.000000e+00> : vector<1xf32>
    %51 = vector.multi_reduction <add>, %50, %cst_38 [0] : vector<8x1xf32> to vector<1xf32>
    %52 = vector.shape_cast %51 : vector<1xf32> to vector<1x1xf32>
    %cst_39 = arith.constant 9.99999993E-9 : f32
    %53 = vector.broadcast %cst_39 : f32 to vector<8x48xf32>
    %54 = arith.addf %5, %53 : vector<8x48xf32>
    %cst_40 = arith.constant 9.99999993E-9 : f32
    %55 = vector.broadcast %cst_40 : f32 to vector<8x48xf32>
    %56 = arith.addf %29, %55 : vector<8x48xf32>
    %57 = arith.mulf %54, %54 : vector<8x48xf32>
    %58 = arith.mulf %7, %7 : vector<8x48xf32>
    %59 = arith.addf %57, %58 : vector<8x48xf32>
    %60 = math.sqrt %59 : vector<8x48xf32>
    %61 = arith.mulf %56, %56 : vector<8x48xf32>
    %62 = arith.mulf %34, %34 : vector<8x48xf32>
    %63 = arith.addf %61, %62 : vector<8x48xf32>
    %64 = math.sqrt %63 : vector<8x48xf32>
    %65 = arith.mulf %54, %56 : vector<8x48xf32>
    %66 = arith.mulf %7, %34 : vector<8x48xf32>
    %67 = arith.addf %65, %66 : vector<8x48xf32>
    %68 = arith.mulf %60, %64 : vector<8x48xf32>
    %69 = arith.divf %67, %68 : vector<8x48xf32>
    %cst_41 = arith.constant 1.000000e+00 : f32
    %70 = vector.broadcast %cst_41 : f32 to vector<8x48xf32>
    %71 = arith.subf %70, %69 : vector<8x48xf32>
    %cst_42 = arith.constant dense<0.000000e+00> : vector<8xf32>
    %72 = vector.multi_reduction <add>, %71, %cst_42 [1] : vector<8x48xf32> to vector<8xf32>
    %73 = vector.shape_cast %72 : vector<8xf32> to vector<8x1xf32>
    %cst_43 = arith.constant dense<0.000000e+00> : vector<1xf32>
    %74 = vector.multi_reduction <add>, %73, %cst_43 [0] : vector<8x1xf32> to vector<1xf32>
    %75 = vector.shape_cast %74 : vector<1xf32> to vector<1x1xf32>
    %76 = math.absf %16 : vector<16x96xf32>
    %cst_44 = arith.constant dense<0.000000e+00> : vector<16xf32>
    %77 = vector.multi_reduction <add>, %76, %cst_44 [1] : vector<16x96xf32> to vector<16xf32>
    %78 = vector.shape_cast %77 : vector<16xf32> to vector<16x1xf32>
    %cst_45 = arith.constant dense<0.000000e+00> : vector<1xf32>
    %79 = vector.multi_reduction <add>, %78, %cst_45 [0] : vector<16x1xf32> to vector<1xf32>
    %80 = vector.shape_cast %79 : vector<1xf32> to vector<1x1xf32>
    %c0_46 = arith.constant 0 : index
    %c0_47 = arith.constant 0 : index
    %81 = vector.load %arg11[%c0_46, %c0_47] : memref<6x16xf32, #tpu.memory_space<vmem>>, vector<6x16xf32>
    %c0_48 = arith.constant 0 : index
    %c0_49 = arith.constant 0 : index
    %82 = vector.load %arg12[%c0_48, %c0_49] : memref<96x36xf32, #tpu.memory_space<vmem>>, vector<96x36xf32>
    %cst_50 = arith.constant dense<0.000000e+00> : vector<16x36xf32>
    %83 = tpu.matmul %11, %82, %cst_50 {dimension_numbers = #tpu.dot_dimension_numbers<[1], [0], [0], [1], [0, 0, 1, 1], [], []>} : vector<16x96xf32>, vector<96x36xf32>, vector<16x36xf32> -> vector<16x36xf32>
    %cst_51 = arith.constant dense<0.000000e+00> : vector<6x36xf32>
    %84 = tpu.matmul %81, %83, %cst_51 {dimension_numbers = #tpu.dot_dimension_numbers<[1], [0], [0], [1], [0, 0, 1, 1], [], []>} : vector<6x16xf32>, vector<16x36xf32>, vector<6x36xf32> -> vector<6x36xf32>
    %cst_52 = arith.constant dense<0.000000e+00> : vector<16x36xf32>
    %85 = tpu.matmul %15, %82, %cst_52 {dimension_numbers = #tpu.dot_dimension_numbers<[1], [0], [0], [1], [0, 0, 1, 1], [], []>} : vector<16x96xf32>, vector<96x36xf32>, vector<16x36xf32> -> vector<16x36xf32>
    %cst_53 = arith.constant dense<0.000000e+00> : vector<6x36xf32>
    %86 = tpu.matmul %81, %85, %cst_53 {dimension_numbers = #tpu.dot_dimension_numbers<[1], [0], [0], [1], [0, 0, 1, 1], [], []>} : vector<6x16xf32>, vector<16x36xf32>, vector<6x36xf32> -> vector<6x36xf32>
    %87 = arith.mulf %11, %11 : vector<16x96xf32>
    %cst_54 = arith.constant dense<0.000000e+00> : vector<16x36xf32>
    %88 = tpu.matmul %87, %82, %cst_54 {dimension_numbers = #tpu.dot_dimension_numbers<[1], [0], [0], [1], [0, 0, 1, 1], [], []>} : vector<16x96xf32>, vector<96x36xf32>, vector<16x36xf32> -> vector<16x36xf32>
    %cst_55 = arith.constant dense<0.000000e+00> : vector<6x36xf32>
    %89 = tpu.matmul %81, %88, %cst_55 {dimension_numbers = #tpu.dot_dimension_numbers<[1], [0], [0], [1], [0, 0, 1, 1], [], []>} : vector<6x16xf32>, vector<16x36xf32>, vector<6x36xf32> -> vector<6x36xf32>
    %90 = arith.mulf %84, %84 : vector<6x36xf32>
    %91 = arith.subf %89, %90 : vector<6x36xf32>
    %92 = arith.mulf %15, %15 : vector<16x96xf32>
    %cst_56 = arith.constant dense<0.000000e+00> : vector<16x36xf32>
    %93 = tpu.matmul %92, %82, %cst_56 {dimension_numbers = #tpu.dot_dimension_numbers<[1], [0], [0], [1], [0, 0, 1, 1], [], []>} : vector<16x96xf32>, vector<96x36xf32>, vector<16x36xf32> -> vector<16x36xf32>
    %cst_57 = arith.constant dense<0.000000e+00> : vector<6x36xf32>
    %94 = tpu.matmul %81, %93, %cst_57 {dimension_numbers = #tpu.dot_dimension_numbers<[1], [0], [0], [1], [0, 0, 1, 1], [], []>} : vector<6x16xf32>, vector<16x36xf32>, vector<6x36xf32> -> vector<6x36xf32>
    %95 = arith.mulf %86, %86 : vector<6x36xf32>
    %96 = arith.subf %94, %95 : vector<6x36xf32>
    %97 = arith.mulf %11, %15 : vector<16x96xf32>
    %cst_58 = arith.constant dense<0.000000e+00> : vector<16x36xf32>
    %98 = tpu.matmul %97, %82, %cst_58 {dimension_numbers = #tpu.dot_dimension_numbers<[1], [0], [0], [1], [0, 0, 1, 1], [], []>} : vector<16x96xf32>, vector<96x36xf32>, vector<16x36xf32> -> vector<16x36xf32>
    %cst_59 = arith.constant dense<0.000000e+00> : vector<6x36xf32>
    %99 = tpu.matmul %81, %98, %cst_59 {dimension_numbers = #tpu.dot_dimension_numbers<[1], [0], [0], [1], [0, 0, 1, 1], [], []>} : vector<6x16xf32>, vector<16x36xf32>, vector<6x36xf32> -> vector<6x36xf32>
    %100 = arith.mulf %84, %86 : vector<6x36xf32>
    %101 = arith.subf %99, %100 : vector<6x36xf32>
    %cst_60 = arith.constant 2.000000e+00 : f32
    %102 = vector.broadcast %cst_60 : f32 to vector<6x36xf32>
    %103 = arith.mulf %102, %84 : vector<6x36xf32>
    %104 = arith.mulf %103, %86 : vector<6x36xf32>
    %cst_61 = arith.constant 9.99999974E-5 : f32
    %105 = vector.broadcast %cst_61 : f32 to vector<6x36xf32>
    %106 = arith.addf %104, %105 : vector<6x36xf32>
    %cst_62 = arith.constant 2.000000e+00 : f32
    %107 = vector.broadcast %cst_62 : f32 to vector<6x36xf32>
    %108 = arith.mulf %107, %101 : vector<6x36xf32>
    %cst_63 = arith.constant 8.99999984E-4 : f32
    %109 = vector.broadcast %cst_63 : f32 to vector<6x36xf32>
    %110 = arith.addf %108, %109 : vector<6x36xf32>
    %111 = arith.mulf %106, %110 : vector<6x36xf32>
    %112 = arith.mulf %84, %84 : vector<6x36xf32>
    %113 = arith.mulf %86, %86 : vector<6x36xf32>
    %114 = arith.addf %112, %113 : vector<6x36xf32>
    %cst_64 = arith.constant 9.99999974E-5 : f32
    %115 = vector.broadcast %cst_64 : f32 to vector<6x36xf32>
    %116 = arith.addf %114, %115 : vector<6x36xf32>
    %117 = arith.addf %91, %96 : vector<6x36xf32>
    %cst_65 = arith.constant 8.99999984E-4 : f32
    %118 = vector.broadcast %cst_65 : f32 to vector<6x36xf32>
    %119 = arith.addf %117, %118 : vector<6x36xf32>
    %120 = arith.mulf %116, %119 : vector<6x36xf32>
    %121 = arith.divf %111, %120 : vector<6x36xf32>
    %cst_66 = arith.constant dense<0.000000e+00> : vector<6xf32>
    %122 = vector.multi_reduction <add>, %121, %cst_66 [1] : vector<6x36xf32> to vector<6xf32>
    %123 = vector.shape_cast %122 : vector<6xf32> to vector<6x1xf32>
    %cst_67 = arith.constant dense<0.000000e+00> : vector<1xf32>
    %124 = vector.multi_reduction <add>, %123, %cst_67 [0] : vector<6x1xf32> to vector<1xf32>
    %125 = vector.shape_cast %124 : vector<1xf32> to vector<1x1xf32>
    %c0_68 = arith.constant 0 : index
    %c0_69 = arith.constant 0 : index
    %126 = vector.load %arg13[%c0_68, %c0_69] : memref<16x16xf32, #tpu.memory_space<vmem>>, vector<16x16xf32>
    %c0_70 = arith.constant 0 : index
    %c0_71 = arith.constant 0 : index
    %127 = vector.load %arg16[%c0_70, %c0_71] : memref<96x96xf32, #tpu.memory_space<vmem>>, vector<96x96xf32>
    %cst_72 = arith.constant dense<0.000000e+00> : vector<16x96xf32>
    %128 = tpu.matmul %16, %127, %cst_72 {dimension_numbers = #tpu.dot_dimension_numbers<[1], [0], [0], [1], [0, 0, 1, 1], [], []>} : vector<16x96xf32>, vector<96x96xf32>, vector<16x96xf32> -> vector<16x96xf32>
    %cst_73 = arith.constant dense<0.000000e+00> : vector<16x96xf32>
    %129 = tpu.matmul %126, %128, %cst_73 {dimension_numbers = #tpu.dot_dimension_numbers<[1], [0], [0], [1], [0, 0, 1, 1], [], []>} : vector<16x16xf32>, vector<16x96xf32>, vector<16x96xf32> -> vector<16x96xf32>
    %c0_74 = arith.constant 0 : index
    %c0_75 = arith.constant 0 : index
    %130 = vector.load %arg14[%c0_74, %c0_75] : memref<16x16xf32, #tpu.memory_space<vmem>>, vector<16x16xf32>
    %c0_76 = arith.constant 0 : index
    %c0_77 = arith.constant 0 : index
    %131 = vector.load %arg15[%c0_76, %c0_77] : memref<96x96xf32, #tpu.memory_space<vmem>>, vector<96x96xf32>
    %cst_78 = arith.constant dense<0.000000e+00> : vector<16x96xf32>
    %132 = tpu.matmul %16, %131, %cst_78 {dimension_numbers = #tpu.dot_dimension_numbers<[1], [0], [0], [1], [0, 0, 1, 1], [], []>} : vector<16x96xf32>, vector<96x96xf32>, vector<16x96xf32> -> vector<16x96xf32>
    %cst_79 = arith.constant dense<0.000000e+00> : vector<16x96xf32>
    %133 = tpu.matmul %130, %132, %cst_79 {dimension_numbers = #tpu.dot_dimension_numbers<[1], [0], [0], [1], [0, 0, 1, 1], [], []>} : vector<16x16xf32>, vector<16x96xf32>, vector<16x96xf32> -> vector<16x96xf32>
    %134 = math.absf %129 : vector<16x96xf32>
    %135 = math.absf %133 : vector<16x96xf32>
    %136 = arith.addf %134, %135 : vector<16x96xf32>
    %cst_80 = arith.constant dense<0.000000e+00> : vector<16xf32>
    %137 = vector.multi_reduction <add>, %136, %cst_80 [1] : vector<16x96xf32> to vector<16xf32>
    %138 = vector.shape_cast %137 : vector<16xf32> to vector<16x1xf32>
    %cst_81 = arith.constant dense<0.000000e+00> : vector<1xf32>
    %139 = vector.multi_reduction <add>, %138, %cst_81 [0] : vector<16x1xf32> to vector<1xf32>
    %140 = vector.shape_cast %139 : vector<1xf32> to vector<1x1xf32>
    %141 = tpu.iota {dimensions = array<i32: 1>} : vector<1x128xi32>
    %c0_i32 = arith.constant 0 : i32
    %142 = vector.broadcast %c0_i32 : i32 to vector<1x128xi32>
    %143 = arith.cmpi eq, %141, %142 : vector<1x128xi32>
    %cst_82 = arith.constant 0.000000e+00 : f32
    %144 = vector.shape_cast %80 : vector<1x1xf32> to vector<1x1xf32>
    %145 = vector.broadcast %144 : vector<1x1xf32> to vector<1x128xf32>
    %146 = vector.broadcast %cst_82 : f32 to vector<1x128xf32>
    %147 = arith.select %143, %145, %146 : vector<1x128xi1>, vector<1x128xf32>
    %c1_i32 = arith.constant 1 : i32
    %148 = vector.broadcast %c1_i32 : i32 to vector<1x128xi32>
    %149 = arith.cmpi eq, %141, %148 : vector<1x128xi32>
    %cst_83 = arith.constant 0.000000e+00 : f32
    %150 = vector.shape_cast %52 : vector<1x1xf32> to vector<1x1xf32>
    %151 = vector.broadcast %150 : vector<1x1xf32> to vector<1x128xf32>
    %152 = vector.broadcast %cst_83 : f32 to vector<1x128xf32>
    %153 = arith.select %149, %151, %152 : vector<1x128xi1>, vector<1x128xf32>
    %154 = arith.addf %147, %153 : vector<1x128xf32>
    %c2_i32 = arith.constant 2 : i32
    %155 = vector.broadcast %c2_i32 : i32 to vector<1x128xi32>
    %156 = arith.cmpi eq, %141, %155 : vector<1x128xi32>
    %cst_84 = arith.constant 0.000000e+00 : f32
    %157 = vector.shape_cast %75 : vector<1x1xf32> to vector<1x1xf32>
    %158 = vector.broadcast %157 : vector<1x1xf32> to vector<1x128xf32>
    %159 = vector.broadcast %cst_84 : f32 to vector<1x128xf32>
    %160 = arith.select %156, %158, %159 : vector<1x128xi1>, vector<1x128xf32>
    %161 = arith.addf %154, %160 : vector<1x128xf32>
    %c3_i32 = arith.constant 3 : i32
    %162 = vector.broadcast %c3_i32 : i32 to vector<1x128xi32>
    %163 = arith.cmpi eq, %141, %162 : vector<1x128xi32>
    %cst_85 = arith.constant 0.000000e+00 : f32
    %164 = vector.shape_cast %125 : vector<1x1xf32> to vector<1x1xf32>
    %165 = vector.broadcast %164 : vector<1x1xf32> to vector<1x128xf32>
    %166 = vector.broadcast %cst_85 : f32 to vector<1x128xf32>
    %167 = arith.select %163, %165, %166 : vector<1x128xi1>, vector<1x128xf32>
    %168 = arith.addf %161, %167 : vector<1x128xf32>
    %c4_i32 = arith.constant 4 : i32
    %169 = vector.broadcast %c4_i32 : i32 to vector<1x128xi32>
    %170 = arith.cmpi eq, %141, %169 : vector<1x128xi32>
    %cst_86 = arith.constant 0.000000e+00 : f32
    %171 = vector.shape_cast %140 : vector<1x1xf32> to vector<1x1xf32>
    %172 = vector.broadcast %171 : vector<1x1xf32> to vector<1x128xf32>
    %173 = vector.broadcast %cst_86 : f32 to vector<1x128xf32>
    %174 = arith.select %170, %172, %173 : vector<1x128xi1>, vector<1x128xf32>
    %175 = arith.addf %168, %174 : vector<1x128xf32>
    %176 = vector.shape_cast %175 : vector<1x128xf32> to vector<1x1x128xf32>
    %c0_87 = arith.constant 0 : index
    %c0_88 = arith.constant 0 : index
    %c0_89 = arith.constant 0 : index
    %177 = vector.load %arg17[%c0_87, %c0_88, %c0_89] : memref<1x1x128xf32, #tpu.memory_space<vmem>>, vector<1x1x128xf32>
    tpu.vector_store %arg17[%c0_87, %c0_88, %c0_89], %176 {strides = array<i32>} : memref<1x1x128xf32, #tpu.memory_space<vmem>>, vector<1x1x128xf32>,
    return
  }
  func.func @transform_0(%arg0: i32) -> (i32, i32, i32) {
    %c0_i32 = arith.constant 0 : i32
    %c0_i32_0 = arith.constant 0 : i32
    %c0_i32_1 = arith.constant 0 : i32
    return %arg0, %c0_i32, %c0_i32_0 : i32, i32, i32
  }
  func.func @transform_1(%arg0: i32) -> (i32, i32, i32) {
    %c0_i32 = arith.constant 0 : i32
    %c0_i32_0 = arith.constant 0 : i32
    %c0_i32_1 = arith.constant 0 : i32
    return %arg0, %c0_i32, %c0_i32_0 : i32, i32, i32
  }
  func.func @transform_2(%arg0: i32) -> (i32, i32, i32) {
    %c0_i32 = arith.constant 0 : i32
    %c0_i32_0 = arith.constant 0 : i32
    %c0_i32_1 = arith.constant 0 : i32
    return %arg0, %c0_i32, %c0_i32_0 : i32, i32, i32
  }
  func.func @transform_3(%arg0: i32) -> (i32, i32, i32) {
    %c0_i32 = arith.constant 0 : i32
    %c0_i32_0 = arith.constant 0 : i32
    %c0_i32_1 = arith.constant 0 : i32
    return %arg0, %c0_i32, %c0_i32_0 : i32, i32, i32
  }
  func.func @transform_4(%arg0: i32) -> (i32, i32) {
    %c0_i32 = arith.constant 0 : i32
    %c0_i32_0 = arith.constant 0 : i32
    %c0_i32_1 = arith.constant 0 : i32
    return %c0_i32, %c0_i32_0 : i32, i32
  }
  func.func @transform_5(%arg0: i32) -> (i32, i32) {
    %c0_i32 = arith.constant 0 : i32
    %c0_i32_0 = arith.constant 0 : i32
    %c0_i32_1 = arith.constant 0 : i32
    return %c0_i32, %c0_i32_0 : i32, i32
  }
  func.func @transform_6(%arg0: i32) -> (i32, i32) {
    %c0_i32 = arith.constant 0 : i32
    %c0_i32_0 = arith.constant 0 : i32
    %c0_i32_1 = arith.constant 0 : i32
    return %c0_i32, %c0_i32_0 : i32, i32
  }
  func.func @transform_7(%arg0: i32) -> (i32, i32) {
    %c0_i32 = arith.constant 0 : i32
    %c0_i32_0 = arith.constant 0 : i32
    %c0_i32_1 = arith.constant 0 : i32
    return %c0_i32, %c0_i32_0 : i32, i32
  }
  func.func @transform_8(%arg0: i32) -> (i32, i32) {
    %c0_i32 = arith.constant 0 : i32
    %c0_i32_0 = arith.constant 0 : i32
    %c0_i32_1 = arith.constant 0 : i32
    return %c0_i32, %c0_i32_0 : i32, i32
  }
  func.func @transform_9(%arg0: i32) -> (i32, i32) {
    %c0_i32 = arith.constant 0 : i32
    %c0_i32_0 = arith.constant 0 : i32
    %c0_i32_1 = arith.constant 0 : i32
    return %c0_i32, %c0_i32_0 : i32, i32
  }
  func.func @transform_10(%arg0: i32) -> (i32, i32) {
    %c0_i32 = arith.constant 0 : i32
    %c0_i32_0 = arith.constant 0 : i32
    %c0_i32_1 = arith.constant 0 : i32
    return %c0_i32, %c0_i32_0 : i32, i32
  }
  func.func @transform_11(%arg0: i32) -> (i32, i32) {
    %c0_i32 = arith.constant 0 : i32
    %c0_i32_0 = arith.constant 0 : i32
    %c0_i32_1 = arith.constant 0 : i32
    return %c0_i32, %c0_i32_0 : i32, i32
  }
  func.func @transform_12(%arg0: i32) -> (i32, i32) {
    %c0_i32 = arith.constant 0 : i32
    %c0_i32_0 = arith.constant 0 : i32
    %c0_i32_1 = arith.constant 0 : i32
    return %c0_i32, %c0_i32_0 : i32, i32
  }
  func.func @transform_13(%arg0: i32) -> (i32, i32) {
    %c0_i32 = arith.constant 0 : i32
    %c0_i32_0 = arith.constant 0 : i32
    %c0_i32_1 = arith.constant 0 : i32
    return %c0_i32, %c0_i32_0 : i32, i32
  }
  func.func @transform_14(%arg0: i32) -> (i32, i32) {
    %c0_i32 = arith.constant 0 : i32
    %c0_i32_0 = arith.constant 0 : i32
    %c0_i32_1 = arith.constant 0 : i32
    return %c0_i32, %c0_i32_0 : i32, i32
  }
  func.func @transform_15(%arg0: i32) -> (i32, i32) {
    %c0_i32 = arith.constant 0 : i32
    %c0_i32_0 = arith.constant 0 : i32
    %c0_i32_1 = arith.constant 0 : i32
    return %c0_i32, %c0_i32_0 : i32, i32
  }
  func.func @transform_16(%arg0: i32) -> (i32, i32, i32) {
    %c0_i32 = arith.constant 0 : i32
    %c0_i32_0 = arith.constant 0 : i32
    %c0_i32_1 = arith.constant 0 : i32
    return %arg0, %c0_i32, %c0_i32_0 : i32, i32, i32
  }
}

</mosaic_0001>

<llo_original>
// kernel: cfdn_loss.1
$region0: #{cfdn_loss.1}
  #allocation0 [shape = 'u32[]', space=smem, size = 0x4, offset = 0x4, fixed_abs, tag = 'smem constant byte address 0x4 - core index']
  #allocation1 [shape = 'u32[144,128]{1,0:T(1,128)}', space=vmem, size = 0x12000, scoped, tag = 'internal scratch']
  %s0 = inlined_call_operand.vmem [shape: f32[1,16,96], index: 0, kind: input, shape index: {}]
  %s1 = inlined_call_operand.vmem [shape: f32[1,16,96], index: 1, kind: input, shape index: {}]
  %s2 = inlined_call_operand.vmem [shape: f32[1,8,48], index: 2, kind: input, shape index: {}]
  %s3 = inlined_call_operand.vmem [shape: f32[1,8,48], index: 3, kind: input, shape index: {}]
  %s4 = inlined_call_operand.vmem [shape: f32[8,16], index: 4, kind: input, shape index: {}]
  %s5 = inlined_call_operand.vmem [shape: f32[96,48], index: 5, kind: input, shape index: {}]
  %s6 = inlined_call_operand.vmem [shape: f32[8,8], index: 6, kind: input, shape index: {}]
  %s7 = inlined_call_operand.vmem [shape: f32[8,8], index: 7, kind: input, shape index: {}]
  %s8 = inlined_call_operand.vmem [shape: f32[48,48], index: 8, kind: input, shape index: {}]
  %s9 = inlined_call_operand.vmem [shape: f32[48,48], index: 9, kind: input, shape index: {}]
  %s10 = inlined_call_operand.vmem [shape: f32[6,16], index: 10, kind: input, shape index: {}]
  %s11 = inlined_call_operand.vmem [shape: f32[96,36], index: 11, kind: input, shape index: {}]
  %s12 = inlined_call_operand.vmem [shape: f32[16,16], index: 12, kind: input, shape index: {}]
  %s13 = inlined_call_operand.vmem [shape: f32[16,16], index: 13, kind: input, shape index: {}]
  %s14 = inlined_call_operand.vmem [shape: f32[96,96], index: 14, kind: input, shape index: {}]
  %s15 = inlined_call_operand.vmem [shape: f32[96,96], index: 15, kind: input, shape index: {}]
  %s16 = inlined_call_operand.vmem [shape: f32[1,1,128], index: 16, kind: output, shape index: {}]
  %s17 = sld [smem:[#allocation0]]
  $region74: #{cfdn_loss.1} parent=0
    _
  %s19 = ssub.s32 1, %s17
  %s20 = scalar_select 0, %s19, %s17
  // Predicated region
  $region2: #{cfdn_loss.1} parent=0 // pred_check
    _
  $region3: #{cfdn_loss.1} parent=0 // pred_check_branch
    %22 = sbr.rel (0) target = $region5
  $region4: #{cfdn_loss.1} parent=0 // pred_region
    _
  $region5: #{cfdn_loss.1} parent=0 // pred_fallthru
    _
  // Predicated region
  $region6: #{cfdn_loss.1} parent=0 // pred_check
    _
  $region7: #{cfdn_loss.1} parent=0 // pred_check_branch
    %24 = sbr.rel (0) target = $region9
  $region8: #{cfdn_loss.1} parent=0 // pred_region
    _
  $region9: #{cfdn_loss.1} parent=0 // pred_fallthru
    _
  // Predicated region
  $region10: #{cfdn_loss.1} parent=0 // pred_check
    _
  $region11: #{cfdn_loss.1} parent=0 // pred_check_branch
    %26 = sbr.rel (0) target = $region13
  $region12: #{cfdn_loss.1} parent=0 // pred_region
    _
  $region13: #{cfdn_loss.1} parent=0 // pred_fallthru
    _
  // Predicated region
  $region14: #{cfdn_loss.1} parent=0 // pred_check
    _
  $region15: #{cfdn_loss.1} parent=0 // pred_check_branch
    %28 = sbr.rel (0) target = $region17
  $region16: #{cfdn_loss.1} parent=0 // pred_region
    _
  $region17: #{cfdn_loss.1} parent=0 // pred_fallthru
    _
  // Predicated region
  $region18: #{cfdn_loss.1} parent=0 // pred_check
    _
  $region19: #{cfdn_loss.1} parent=0 // pred_check_branch
    %30 = sbr.rel (0) target = $region21
  $region20: #{cfdn_loss.1} parent=0 // pred_region
    _
  $region21: #{cfdn_loss.1} parent=0 // pred_fallthru
    _
  // Predicated region
  $region22: #{cfdn_loss.1} parent=0 // pred_check
    _
  $region23: #{cfdn_loss.1} parent=0 // pred_check_branch
    %32 = sbr.rel (0) target = $region25
  $region24: #{cfdn_loss.1} parent=0 // pred_region
    _
  $region25: #{cfdn_loss.1} parent=0 // pred_fallthru
    _
  // Predicated region
  $region26: #{cfdn_loss.1} parent=0 // pred_check
    _
  $region27: #{cfdn_loss.1} parent=0 // pred_check_branch
    %34 = sbr.rel (0) target = $region29
  $region28: #{cfdn_loss.1} parent=0 // pred_region
    _
  $region29: #{cfdn_loss.1} parent=0 // pred_fallthru
    _
  // Predicated region
  $region30: #{cfdn_loss.1} parent=0 // pred_check
    _
  $region31: #{cfdn_loss.1} parent=0 // pred_check_branch
    %36 = sbr.rel (0) target = $region33
  $region32: #{cfdn_loss.1} parent=0 // pred_region
    _
  $region33: #{cfdn_loss.1} parent=0 // pred_fallthru
    _
  // Predicated region
  $region34: #{cfdn_loss.1} parent=0 // pred_check
    _
  $region35: #{cfdn_loss.1} parent=0 // pred_check_branch
    %38 = sbr.rel (0) target = $region37
  $region36: #{cfdn_loss.1} parent=0 // pred_region
    _
  $region37: #{cfdn_loss.1} parent=0 // pred_fallthru
    _
  // Predicated region
  $region38: #{cfdn_loss.1} parent=0 // pred_check
    _
  $region39: #{cfdn_loss.1} parent=0 // pred_check_branch
    %40 = sbr.rel (0) target = $region41
  $region40: #{cfdn_loss.1} parent=0 // pred_region
    _
  $region41: #{cfdn_loss.1} parent=0 // pred_fallthru
    _
  // Predicated region
  $region42: #{cfdn_loss.1} parent=0 // pred_check
    _
  $region43: #{cfdn_loss.1} parent=0 // pred_check_branch
    %42 = sbr.rel (0) target = $region45
  $region44: #{cfdn_loss.1} parent=0 // pred_region
    _
  $region45: #{cfdn_loss.1} parent=0 // pred_fallthru
    _
  // Predicated region
  $region46: #{cfdn_loss.1} parent=0 // pred_check
    _
  $region47: #{cfdn_loss.1} parent=0 // pred_check_branch
    %44 = sbr.rel (0) target = $region49
  $region48: #{cfdn_loss.1} parent=0 // pred_region
    _
  $region49: #{cfdn_loss.1} parent=0 // pred_fallthru
    _
  // Predicated region
  $region50: #{cfdn_loss.1} parent=0 // pred_check
    _
  $region51: #{cfdn_loss.1} parent=0 // pred_check_branch
    %46 = sbr.rel (0) target = $region53
  $region52: #{cfdn_loss.1} parent=0 // pred_region
    _
  $region53: #{cfdn_loss.1} parent=0 // pred_fallthru
    _
  // Predicated region
  $region54: #{cfdn_loss.1} parent=0 // pred_check
    _
  $region55: #{cfdn_loss.1} parent=0 // pred_check_branch
    %48 = sbr.rel (0) target = $region57
  $region56: #{cfdn_loss.1} parent=0 // pred_region
    _
  $region57: #{cfdn_loss.1} parent=0 // pred_fallthru
    _
  // Predicated region
  $region58: #{cfdn_loss.1} parent=0 // pred_check
    _
  $region59: #{cfdn_loss.1} parent=0 // pred_check_branch
    %50 = sbr.rel (0) target = $region61
  $region60: #{cfdn_loss.1} parent=0 // pred_region
    _
  $region61: #{cfdn_loss.1} parent=0 // pred_fallthru
    _
  // Predicated region
  $region62: #{cfdn_loss.1} parent=0 // pred_check
    _
  $region63: #{cfdn_loss.1} parent=0 // pred_check_branch
    %52 = sbr.rel (0) target = $region65
  $region64: #{cfdn_loss.1} parent=0 // pred_region
    _
  $region65: #{cfdn_loss.1} parent=0 // pred_fallthru
    _
  %v53 = vld [vmem:[%s0] sm:$0xff]
  %v54 = vld [vmem:[%s0 + $0x8] sm:$0xff]
  %v55 = vld [vmem:[%s1] sm:$0xff]
  %v56 = vld [vmem:[%s1 + $0x8] sm:$0xff]
  %v57 = vld [vmem:[%s2] sm:$0xff]
  %v58 = vld [vmem:[%s3] sm:$0xff]
  %v59 = vadd.f32 %v53, 1.0
  %v60 = vadd.f32 %v54, 1.0
  %v61 = vmul.f32 %v59, 0.5
  %v62 = vmul.f32 %v60, 0.5
  %v63 = vadd.f32 %v55, 1.0
  %v64 = vadd.f32 %v56, 1.0
  %v65 = vmul.f32 %v63, 0.5
  %v66 = vmul.f32 %v64, 0.5
  %v67 = vsub.f32 %v61, %v65
  %v68 = vsub.f32 %v62, %v66
  %v69 = vld [vmem:[%s4] sm:$0xff]
  %v70 = vld [vmem:[%s5] sm:$0xff]
  %v71 = vld [vmem:[%s5 + $0x8] sm:$0xff]
  %v72 = vld [vmem:[%s5 + $0x10] sm:$0xff]
  %v73 = vld [vmem:[%s5 + $0x18] sm:$0xff]
  %v74 = vld [vmem:[%s5 + $0x20] sm:$0xff]
  %v75 = vld [vmem:[%s5 + $0x28] sm:$0xff]
  %v76 = vld [vmem:[%s5 + $0x30] sm:$0xff]
  %v77 = vld [vmem:[%s5 + $0x38] sm:$0xff]
  %v78 = vld [vmem:[%s5 + $0x40] sm:$0xff]
  %v79 = vld [vmem:[%s5 + $0x48] sm:$0xff]
  %v80 = vld [vmem:[%s5 + $0x50] sm:$0xff]
  %v81 = vld [vmem:[%s5 + $0x58] sm:$0xff]
  %vm82 = vcmask 785408
  %v84 = vsel %vm82, %v55, 0
  %v87 = vsel %vm82, %v56, 0
  %89 = vmatprep.subr.mxu0 0.0
  %90 = vmatpush1.msra.mxu0 0.0
  %91 = vmatprep.subr.mxu0 0.0
  %92 = vmatpush1.msra.mxu0 0.0
  %93 = vmatprep.subr.mxu0 0.0
  %94 = vmatpush1.msra.mxu0 0.0
  %95 = vmatprep.subr.mxu0 0.0
  %96 = vmatpush1.msra.mxu0 0.0
  %97 = vmatprep.subr.mxu0 0.0
  %98 = vmatpush1.msra.mxu0 %v81
  %99 = vmatprep.subr.mxu0 0.0
  %100 = vmatpush1.msra.mxu0 %v80
  %101 = vmatprep.subr.mxu0 0.0
  %102 = vmatpush1.msra.mxu0 %v79
  %103 = vmatprep.subr.mxu0 0.0
  %104 = vmatpush1.msra.mxu0 %v78
  %105 = vmatprep.subr.mxu0 0.0
  %106 = vmatpush1.msra.mxu0 %v77
  %107 = vmatprep.subr.mxu0 0.0
  %108 = vmatpush1.msra.mxu0 %v76
  %109 = vmatprep.subr.mxu0 0.0
  %110 = vmatpush1.msra.mxu0 %v75
  %111 = vmatprep.subr.mxu0 0.0
  %112 = vmatpush1.msra.mxu0 %v74
  %113 = vmatprep.subr.mxu0 0.0
  %114 = vmatpush1.msra.mxu0 %v73
  %115 = vmatprep.subr.mxu0 0.0
  %116 = vmatpush1.msra.mxu0 %v72
  %117 = vmatprep.subr.mxu0 0.0
  %118 = vmatpush1.msra.mxu0 %v71
  %119 = vmatprep.subr.mxu0 0.0
  %120 = vmatpush1.msra.mxu0 %v70
  %121 = vmatprep.subr.mxu0 0.0
  %122 = vmatpush2.msra.mxu0 0.0
  %123 = vmatprep.subr.mxu0 0.0
  %124 = vmatpush2.msra.mxu0 0.0
  %125 = vmatprep.subr.mxu0 0.0
  %126 = vmatpush2.msra.mxu0 0.0
  %127 = vmatprep.subr.mxu0 0.0
  %128 = vmatpush2.msra.mxu0 0.0
  %129 = vmatprep.subr.mxu0 0.0
  %130 = vmatpush2.msra.mxu0 0.0
  %131 = vmatprep.subr.mxu0 0.0
  %132 = vmatpush2.msra.mxu0 0.0
  %133 = vmatprep.subr.mxu0 0.0
  %134 = vmatpush2.msra.mxu0 0.0
  %135 = vmatprep.subr.mxu0 0.0
  %136 = vmatpush2.msra.mxu0 0.0
  %137 = vmatprep.subr.mxu0 0.0
  %138 = vmatpush2.msra.mxu0 0.0
  %139 = vmatprep.subr.mxu0 0.0
  %140 = vmatpush2.msra.mxu0 0.0
  %141 = vmatprep.subr.mxu0 0.0
  %142 = vmatpush2.msra.mxu0 0.0
  %143 = vmatprep.subr.mxu0 0.0
  %144 = vmatpush2.msra.mxu0 0.0
  %145 = vmatprep.subr.mxu0 0.0
  %146 = vmatpush2.msra.mxu0 0.0
  %147 = vmatprep.subr.mxu0 0.0
  %148 = vmatpush2.msra.mxu0 0.0
  %149 = vmatprep.subr.mxu0 0.0
  %150 = vmatpush2.msra.mxu0 0.0
  %151 = vmatprep.subr.mxu0 0.0
  %152 = vmatpush2.msra.mxu0 0.0
  %153 = vmatprep.mubr.f32.mxu0 0.0
  %154 = vmatmul.mubr.f32.gmra.mxu0 %v84
  %v155 = vpop.f32.mrf.mxu0
  %v156 = vadd.f32 0.0, %v155
  %v157 = vpop.f32.mrf.mxu0
  %158 = vmatprep.mubr.f32.mxu0 0.0
  %159 = vmatmul.mubr.f32.gmra.mxu0 %v87
  %v160 = vpop.f32.mrf.mxu0
  %v161 = vadd.f32 0.0, %v160
  %v162 = vpop.f32.mrf.mxu0
  %163 = vdwg.mxu0
  %vm164 = vcmask 130048
  %v166 = vsel %vm164, %v69, 0
  %168 = vmatprep.subr.mxu0 0.0
  %169 = vmatpush1.msra.mxu0 0.0
  %170 = vmatprep.subr.mxu0 0.0
  %171 = vmatpush1.msra.mxu0 0.0
  %172 = vmatprep.subr.mxu0 0.0
  %173 = vmatpush1.msra.mxu0 0.0
  %174 = vmatprep.subr.mxu0 0.0
  %175 = vmatpush1.msra.mxu0 0.0
  %176 = vmatprep.subr.mxu0 0.0
  %177 = vmatpush1.msra.mxu0 0.0
  %178 = vmatprep.subr.mxu0 0.0
  %179 = vmatpush1.msra.mxu0 0.0
  %180 = vmatprep.subr.mxu0 0.0
  %181 = vmatpush1.msra.mxu0 0.0
  %182 = vmatprep.subr.mxu0 0.0
  %183 = vmatpush1.msra.mxu0 0.0
  %184 = vmatprep.subr.mxu0 0.0
  %185 = vmatpush1.msra.mxu0 0.0
  %186 = vmatprep.subr.mxu0 0.0
  %187 = vmatpush1.msra.mxu0 0.0
  %188 = vmatprep.subr.mxu0 0.0
  %189 = vmatpush1.msra.mxu0 0.0
  %190 = vmatprep.subr.mxu0 0.0
  %191 = vmatpush1.msra.mxu0 0.0
  %192 = vmatprep.subr.mxu0 0.0
  %193 = vmatpush1.msra.mxu0 0.0
  %194 = vmatprep.subr.mxu0 0.0
  %195 = vmatpush1.msra.mxu0 0.0
  %196 = vmatprep.subr.mxu0 0.0
  %197 = vmatpush1.msra.mxu0 %v161
  %198 = vmatprep.subr.mxu0 0.0
  %199 = vmatpush1.msra.mxu0 %v156
  %200 = vmatprep.subr.mxu0 0.0
  %201 = vmatpush2.msra.mxu0 0.0
  %202 = vmatprep.subr.mxu0 0.0
  %203 = vmatpush2.msra.mxu0 0.0
  %204 = vmatprep.subr.mxu0 0.0
  %205 = vmatpush2.msra.mxu0 0.0
  %206 = vmatprep.subr.mxu0 0.0
  %207 = vmatpush2.msra.mxu0 0.0
  %208 = vmatprep.subr.mxu0 0.0
  %209 = vmatpush2.msra.mxu0 0.0
  %210 = vmatprep.subr.mxu0 0.0
  %211 = vmatpush2.msra.mxu0 0.0
  %212 = vmatprep.subr.mxu0 0.0
  %213 = vmatpush2.msra.mxu0 0.0
  %214 = vmatprep.subr.mxu0 0.0
  %215 = vmatpush2.msra.mxu0 0.0
  %216 = vmatprep.subr.mxu0 0.0
  %217 = vmatpush2.msra.mxu0 0.0
  %218 = vmatprep.subr.mxu0 0.0
  %219 = vmatpush2.msra.mxu0 0.0
  %220 = vmatprep.subr.mxu0 0.0
  %221 = vmatpush2.msra.mxu0 0.0
  %222 = vmatprep.subr.mxu0 0.0
  %223 = vmatpush2.msra.mxu0 0.0
  %224 = vmatprep.subr.mxu0 0.0
  %225 = vmatpush2.msra.mxu0 0.0
  %226 = vmatprep.subr.mxu0 0.0
  %227 = vmatpush2.msra.mxu0 0.0
  %228 = vmatprep.subr.mxu0 0.0
  %229 = vmatpush2.msra.mxu0 0.0
  %230 = vmatprep.subr.mxu0 0.0
  %231 = vmatpush2.msra.mxu0 0.0
  %232 = vmatprep.mubr.f32.mxu0 0.0
  %233 = vmatmul.mubr.f32.gmra.mxu0 %v166
  %v234 = vpop.f32.mrf.mxu0
  %v235 = vadd.f32 0.0, %v234
  %v236 = vpop.f32.mrf.mxu0
  %237 = vdwg.mxu0
  %v238 = vld [vmem:[%s6] sm:$0xff]
  %vm239 = vcmask 64512
  %v241 = vsel %vm239, %v238, 0
  %243 = vmatprep.subr.mxu0 0.0
  %244 = vmatpush1.msra.mxu0 0.0
  %245 = vmatprep.subr.mxu0 0.0
  %246 = vmatpush1.msra.mxu0 0.0
  %247 = vmatprep.subr.mxu0 0.0
  %248 = vmatpush1.msra.mxu0 0.0
  %249 = vmatprep.subr.mxu0 0.0
  %250 = vmatpush1.msra.mxu0 0.0
  %251 = vmatprep.subr.mxu0 0.0
  %252 = vmatpush1.msra.mxu0 0.0
  %253 = vmatprep.subr.mxu0 0.0
  %254 = vmatpush1.msra.mxu0 0.0
  %255 = vmatprep.subr.mxu0 0.0
  %256 = vmatpush1.msra.mxu0 0.0
  %257 = vmatprep.subr.mxu0 0.0
  %258 = vmatpush1.msra.mxu0 0.0
  %259 = vmatprep.subr.mxu0 0.0
  %260 = vmatpush1.msra.mxu0 0.0
  %261 = vmatprep.subr.mxu0 0.0
  %262 = vmatpush1.msra.mxu0 0.0
  %263 = vmatprep.subr.mxu0 0.0
  %264 = vmatpush1.msra.mxu0 0.0
  %265 = vmatprep.subr.mxu0 0.0
  %266 = vmatpush1.msra.mxu0 0.0
  %267 = vmatprep.subr.mxu0 0.0
  %268 = vmatpush1.msra.mxu0 0.0
  %269 = vmatprep.subr.mxu0 0.0
  %270 = vmatpush1.msra.mxu0 0.0
  %271 = vmatprep.subr.mxu0 0.0
  %272 = vmatpush1.msra.mxu0 0.0
  %273 = vmatprep.subr.mxu0 0.0
  %274 = vmatpush1.msra.mxu0 %v235
  %275 = vmatprep.subr.mxu0 0.0
  %276 = vmatpush2.msra.mxu0 0.0
  %277 = vmatprep.subr.mxu0 0.0
  %278 = vmatpush2.msra.mxu0 0.0
  %279 = vmatprep.subr.mxu0 0.0
  %280 = vmatpush2.msra.mxu0 0.0
  %281 = vmatprep.subr.mxu0 0.0
  %282 = vmatpush2.msra.mxu0 0.0
  %283 = vmatprep.subr.mxu0 0.0
  %284 = vmatpush2.msra.mxu0 0.0
  %285 = vmatprep.subr.mxu0 0.0
  %286 = vmatpush2.msra.mxu0 0.0
  %287 = vmatprep.subr.mxu0 0.0
  %288 = vmatpush2.msra.mxu0 0.0
  %289 = vmatprep.subr.mxu0 0.0
  %290 = vmatpush2.msra.mxu0 0.0
  %291 = vmatprep.subr.mxu0 0.0
  %292 = vmatpush2.msra.mxu0 0.0
  %293 = vmatprep.subr.mxu0 0.0
  %294 = vmatpush2.msra.mxu0 0.0
  %295 = vmatprep.subr.mxu0 0.0
  %296 = vmatpush2.msra.mxu0 0.0
  %297 = vmatprep.subr.mxu0 0.0
  %298 = vmatpush2.msra.mxu0 0.0
  %299 = vmatprep.subr.mxu0 0.0
  %300 = vmatpush2.msra.mxu0 0.0
  %301 = vmatprep.subr.mxu0 0.0
  %302 = vmatpush2.msra.mxu0 0.0
  %303 = vmatprep.subr.mxu0 0.0
  %304 = vmatpush2.msra.mxu0 0.0
  %305 = vmatprep.subr.mxu0 0.0
  %306 = vmatpush2.msra.mxu0 0.0
  %307 = vmatprep.mubr.f32.mxu0 0.0
  %308 = vmatmul.mubr.f32.gmra.mxu0 %v241
  %v309 = vpop.f32.mrf.mxu0
  %v310 = vadd.f32 0.0, %v309
  %v311 = vpop.f32.mrf.mxu0
  %312 = vdwg.mxu0
  %v313 = vld [vmem:[%s7] sm:$0xff]
  %v315 = vsel %vm239, %v313, 0
  %317 = vmatprep.subr.mxu0 0.0
  %318 = vmatpush1.msra.mxu0 0.0
  %319 = vmatprep.subr.mxu0 0.0
  %320 = vmatpush1.msra.mxu0 0.0
  %321 = vmatprep.subr.mxu0 0.0
  %322 = vmatpush1.msra.mxu0 0.0
  %323 = vmatprep.subr.mxu0 0.0
  %324 = vmatpush1.msra.mxu0 0.0
  %325 = vmatprep.subr.mxu0 0.0
  %326 = vmatpush1.msra.mxu0 0.0
  %327 = vmatprep.subr.mxu0 0.0
  %328 = vmatpush1.msra.mxu0 0.0
  %329 = vmatprep.subr.mxu0 0.0
  %330 = vmatpush1.msra.mxu0 0.0
  %331 = vmatprep.subr.mxu0 0.0
  %332 = vmatpush1.msra.mxu0 0.0
  %333 = vmatprep.subr.mxu0 0.0
  %334 = vmatpush1.msra.mxu0 0.0
  %335 = vmatprep.subr.mxu0 0.0
  %336 = vmatpush1.msra.mxu0 0.0
  %337 = vmatprep.subr.mxu0 0.0
  %338 = vmatpush1.msra.mxu0 0.0
  %339 = vmatprep.subr.mxu0 0.0
  %340 = vmatpush1.msra.mxu0 0.0
  %341 = vmatprep.subr.mxu0 0.0
  %342 = vmatpush1.msra.mxu0 0.0
  %343 = vmatprep.subr.mxu0 0.0
  %344 = vmatpush1.msra.mxu0 0.0
  %345 = vmatprep.subr.mxu0 0.0
  %346 = vmatpush1.msra.mxu0 0.0
  %347 = vmatprep.subr.mxu0 0.0
  %348 = vmatpush1.msra.mxu0 %v235
  %349 = vmatprep.subr.mxu0 0.0
  %350 = vmatpush2.msra.mxu0 0.0
  %351 = vmatprep.subr.mxu0 0.0
  %352 = vmatpush2.msra.mxu0 0.0
  %353 = vmatprep.subr.mxu0 0.0
  %354 = vmatpush2.msra.mxu0 0.0
  %355 = vmatprep.subr.mxu0 0.0
  %356 = vmatpush2.msra.mxu0 0.0
  %357 = vmatprep.subr.mxu0 0.0
  %358 = vmatpush2.msra.mxu0 0.0
  %359 = vmatprep.subr.mxu0 0.0
  %360 = vmatpush2.msra.mxu0 0.0
  %361 = vmatprep.subr.mxu0 0.0
  %362 = vmatpush2.msra.mxu0 0.0
  %363 = vmatprep.subr.mxu0 0.0
  %364 = vmatpush2.msra.mxu0 0.0
  %365 = vmatprep.subr.mxu0 0.0
  %366 = vmatpush2.msra.mxu0 0.0
  %367 = vmatprep.subr.mxu0 0.0
  %368 = vmatpush2.msra.mxu0 0.0
  %369 = vmatprep.subr.mxu0 0.0
  %370 = vmatpush2.msra.mxu0 0.0
  %371 = vmatprep.subr.mxu0 0.0
  %372 = vmatpush2.msra.mxu0 0.0
  %373 = vmatprep.subr.mxu0 0.0
  %374 = vmatpush2.msra.mxu0 0.0
  %375 = vmatprep.subr.mxu0 0.0
  %376 = vmatpush2.msra.mxu0 0.0
  %377 = vmatprep.subr.mxu0 0.0
  %378 = vmatpush2.msra.mxu0 0.0
  %379 = vmatprep.subr.mxu0 0.0
  %380 = vmatpush2.msra.mxu0 0.0
  %381 = vmatprep.mubr.f32.mxu0 0.0
  %382 = vmatmul.mubr.f32.gmra.mxu0 %v315
  %v383 = vpop.f32.mrf.mxu0
  %v384 = vadd.f32 0.0, %v383
  %v385 = vpop.f32.mrf.mxu0
  %386 = vdwg.mxu0
  %v387 = vld [vmem:[%s8] sm:$0xff]
  %v388 = vld [vmem:[%s8 + $0x8] sm:$0xff]
  %v389 = vld [vmem:[%s8 + $0x10] sm:$0xff]
  %v390 = vld [vmem:[%s8 + $0x18] sm:$0xff]
  %v391 = vld [vmem:[%s8 + $0x20] sm:$0xff]
  %v392 = vld [vmem:[%s8 + $0x28] sm:$0xff]
  %v393 = vld [vmem:[%s9] sm:$0xff]
  %v394 = vld [vmem:[%s9 + $0x8] sm:$0xff]
  %v395 = vld [vmem:[%s9 + $0x10] sm:$0xff]
  %v396 = vld [vmem:[%s9 + $0x18] sm:$0xff]
  %v397 = vld [vmem:[%s9 + $0x20] sm:$0xff]
  %v398 = vld [vmem:[%s9 + $0x28] sm:$0xff]
  %vm399 = vcmask 392192
  %v401 = vsel %vm399, %v310, 0
  %403 = vmatprep.subr.mxu0 0.0
  %404 = vmatpush1.msra.mxu0 0.0
  %405 = vmatprep.subr.mxu0 0.0
  %406 = vmatpush1.msra.mxu0 0.0
  %407 = vmatprep.subr.mxu0 0.0
  %408 = vmatpush1.msra.mxu0 0.0
  %409 = vmatprep.subr.mxu0 0.0
  %410 = vmatpush1.msra.mxu0 0.0
  %411 = vmatprep.subr.mxu0 0.0
  %412 = vmatpush1.msra.mxu0 0.0
  %413 = vmatprep.subr.mxu0 0.0
  %414 = vmatpush1.msra.mxu0 0.0
  %415 = vmatprep.subr.mxu0 0.0
  %416 = vmatpush1.msra.mxu0 0.0
  %417 = vmatprep.subr.mxu0 0.0
  %418 = vmatpush1.msra.mxu0 0.0
  %419 = vmatprep.subr.mxu0 0.0
  %420 = vmatpush1.msra.mxu0 0.0
  %421 = vmatprep.subr.mxu0 0.0
  %422 = vmatpush1.msra.mxu0 0.0
  %423 = vmatprep.subr.mxu0 0.0
  %424 = vmatpush1.msra.mxu0 %v392
  %425 = vmatprep.subr.mxu0 0.0
  %426 = vmatpush1.msra.mxu0 %v391
  %427 = vmatprep.subr.mxu0 0.0
  %428 = vmatpush1.msra.mxu0 %v390
  %429 = vmatprep.subr.mxu0 0.0
  %430 = vmatpush1.msra.mxu0 %v389
  %431 = vmatprep.subr.mxu0 0.0
  %432 = vmatpush1.msra.mxu0 %v388
  %433 = vmatprep.subr.mxu0 0.0
  %434 = vmatpush1.msra.mxu0 %v387
  %435 = vmatprep.subr.mxu0 0.0
  %436 = vmatpush2.msra.mxu0 0.0
  %437 = vmatprep.subr.mxu0 0.0
  %438 = vmatpush2.msra.mxu0 0.0
  %439 = vmatprep.subr.mxu0 0.0
  %440 = vmatpush2.msra.mxu0 0.0
  %441 = vmatprep.subr.mxu0 0.0
  %442 = vmatpush2.msra.mxu0 0.0
  %443 = vmatprep.subr.mxu0 0.0
  %444 = vmatpush2.msra.mxu0 0.0
  %445 = vmatprep.subr.mxu0 0.0
  %446 = vmatpush2.msra.mxu0 0.0
  %447 = vmatprep.subr.mxu0 0.0
  %448 = vmatpush2.msra.mxu0 0.0
  %449 = vmatprep.subr.mxu0 0.0
  %450 = vmatpush2.msra.mxu0 0.0
  %451 = vmatprep.subr.mxu0 0.0
  %452 = vmatpush2.msra.mxu0 0.0
  %453 = vmatprep.subr.mxu0 0.0
  %454 = vmatpush2.msra.mxu0 0.0
  %455 = vmatprep.subr.mxu0 0.0
  %456 = vmatpush2.msra.mxu0 0.0
  %457 = vmatprep.subr.mxu0 0.0
  %458 = vmatpush2.msra.mxu0 0.0
  %459 = vmatprep.subr.mxu0 0.0
  %460 = vmatpush2.msra.mxu0 0.0
  %461 = vmatprep.subr.mxu0 0.0
  %462 = vmatpush2.msra.mxu0 0.0
  %463 = vmatprep.subr.mxu0 0.0
  %464 = vmatpush2.msra.mxu0 0.0
  %465 = vmatprep.subr.mxu0 0.0
  %466 = vmatpush2.msra.mxu0 0.0
  %467 = vmatprep.mubr.f32.mxu0 0.0
  %468 = vmatmul.mubr.f32.gmra.mxu0 %v401
  %v469 = vpop.f32.mrf.mxu0
  %v470 = vadd.f32 0.0, %v469
  %v471 = vpop.f32.mrf.mxu0
  %472 = vdwg.mxu0
  %v474 = vsel %vm399, %v384, 0
  %476 = vmatprep.subr.mxu0 0.0
  %477 = vmatpush1.msra.mxu0 0.0
  %478 = vmatprep.subr.mxu0 0.0
  %479 = vmatpush1.msra.mxu0 0.0
  %480 = vmatprep.subr.mxu0 0.0
  %481 = vmatpush1.msra.mxu0 0.0
  %482 = vmatprep.subr.mxu0 0.0
  %483 = vmatpush1.msra.mxu0 0.0
  %484 = vmatprep.subr.mxu0 0.0
  %485 = vmatpush1.msra.mxu0 0.0
  %486 = vmatprep.subr.mxu0 0.0
  %487 = vmatpush1.msra.mxu0 0.0
  %488 = vmatprep.subr.mxu0 0.0
  %489 = vmatpush1.msra.mxu0 0.0
  %490 = vmatprep.subr.mxu0 0.0
  %491 = vmatpush1.msra.mxu0 0.0
  %492 = vmatprep.subr.mxu0 0.0
  %493 = vmatpush1.msra.mxu0 0.0
  %494 = vmatprep.subr.mxu0 0.0
  %495 = vmatpush1.msra.mxu0 0.0
  %496 = vmatprep.subr.mxu0 0.0
  %497 = vmatpush1.msra.mxu0 %v398
  %498 = vmatprep.subr.mxu0 0.0
  %499 = vmatpush1.msra.mxu0 %v397
  %500 = vmatprep.subr.mxu0 0.0
  %501 = vmatpush1.msra.mxu0 %v396
  %502 = vmatprep.subr.mxu0 0.0
  %503 = vmatpush1.msra.mxu0 %v395
  %504 = vmatprep.subr.mxu0 0.0
  %505 = vmatpush1.msra.mxu0 %v394
  %506 = vmatprep.subr.mxu0 0.0
  %507 = vmatpush1.msra.mxu0 %v393
  %508 = vmatprep.subr.mxu0 0.0
  %509 = vmatpush2.msra.mxu0 0.0
  %510 = vmatprep.subr.mxu0 0.0
  %511 = vmatpush2.msra.mxu0 0.0
  %512 = vmatprep.subr.mxu0 0.0
  %513 = vmatpush2.msra.mxu0 0.0
  %514 = vmatprep.subr.mxu0 0.0
  %515 = vmatpush2.msra.mxu0 0.0
  %516 = vmatprep.subr.mxu0 0.0
  %517 = vmatpush2.msra.mxu0 0.0
  %518 = vmatprep.subr.mxu0 0.0
  %519 = vmatpush2.msra.mxu0 0.0
  %520 = vmatprep.subr.mxu0 0.0
  %521 = vmatpush2.msra.mxu0 0.0
  %522 = vmatprep.subr.mxu0 0.0
  %523 = vmatpush2.msra.mxu0 0.0
  %524 = vmatprep.subr.mxu0 0.0
  %525 = vmatpush2.msra.mxu0 0.0
  %526 = vmatprep.subr.mxu0 0.0
  %527 = vmatpush2.msra.mxu0 0.0
  %528 = vmatprep.subr.mxu0 0.0
  %529 = vmatpush2.msra.mxu0 0.0
  %530 = vmatprep.subr.mxu0 0.0
  %531 = vmatpush2.msra.mxu0 0.0
  %532 = vmatprep.subr.mxu0 0.0
  %533 = vmatpush2.msra.mxu0 0.0
  %534 = vmatprep.subr.mxu0 0.0
  %535 = vmatpush2.msra.mxu0 0.0
  %536 = vmatprep.subr.mxu0 0.0
  %537 = vmatpush2.msra.mxu0 0.0
  %538 = vmatprep.subr.mxu0 0.0
  %539 = vmatpush2.msra.mxu0 0.0
  %540 = vmatprep.mubr.f32.mxu0 0.0
  %541 = vmatmul.mubr.f32.gmra.mxu0 %v474
  %v542 = vpop.f32.mrf.mxu0
  %v543 = vadd.f32 0.0, %v542
  %v544 = vpop.f32.mrf.mxu0
  %545 = vdwg.mxu0
  %v546 = vsub.f32 %v470, %v543
  %547 = vmatprep.subr.mxu0 0.0
  %548 = vmatpush1.msra.mxu0 0.0
  %549 = vmatprep.subr.mxu0 0.0
  %550 = vmatpush1.msra.mxu0 0.0
  %551 = vmatprep.subr.mxu0 0.0
  %552 = vmatpush1.msra.mxu0 0.0
  %553 = vmatprep.subr.mxu0 0.0
  %554 = vmatpush1.msra.mxu0 0.0
  %555 = vmatprep.subr.mxu0 0.0
  %556 = vmatpush1.msra.mxu0 0.0
  %557 = vmatprep.subr.mxu0 0.0
  %558 = vmatpush1.msra.mxu0 0.0
  %559 = vmatprep.subr.mxu0 0.0
  %560 = vmatpush1.msra.mxu0 0.0
  %561 = vmatprep.subr.mxu0 0.0
  %562 = vmatpush1.msra.mxu0 0.0
  %563 = vmatprep.subr.mxu0 0.0
  %564 = vmatpush1.msra.mxu0 0.0
  %565 = vmatprep.subr.mxu0 0.0
  %566 = vmatpush1.msra.mxu0 0.0
  %567 = vmatprep.subr.mxu0 0.0
  %568 = vmatpush1.msra.mxu0 %v392
  %569 = vmatprep.subr.mxu0 0.0
  %570 = vmatpush1.msra.mxu0 %v391
  %571 = vmatprep.subr.mxu0 0.0
  %572 = vmatpush1.msra.mxu0 %v390
  %573 = vmatprep.subr.mxu0 0.0
  %574 = vmatpush1.msra.mxu0 %v389
  %575 = vmatprep.subr.mxu0 0.0
  %576 = vmatpush1.msra.mxu0 %v388
  %577 = vmatprep.subr.mxu0 0.0
  %578 = vmatpush1.msra.mxu0 %v387
  %579 = vmatprep.subr.mxu0 0.0
  %580 = vmatpush2.msra.mxu0 0.0
  %581 = vmatprep.subr.mxu0 0.0
  %582 = vmatpush2.msra.mxu0 0.0
  %583 = vmatprep.subr.mxu0 0.0
  %584 = vmatpush2.msra.mxu0 0.0
  %585 = vmatprep.subr.mxu0 0.0
  %586 = vmatpush2.msra.mxu0 0.0
  %587 = vmatprep.subr.mxu0 0.0
  %588 = vmatpush2.msra.mxu0 0.0
  %589 = vmatprep.subr.mxu0 0.0
  %590 = vmatpush2.msra.mxu0 0.0
  %591 = vmatprep.subr.mxu0 0.0
  %592 = vmatpush2.msra.mxu0 0.0
  %593 = vmatprep.subr.mxu0 0.0
  %594 = vmatpush2.msra.mxu0 0.0
  %595 = vmatprep.subr.mxu0 0.0
  %596 = vmatpush2.msra.mxu0 0.0
  %597 = vmatprep.subr.mxu0 0.0
  %598 = vmatpush2.msra.mxu0 0.0
  %599 = vmatprep.subr.mxu0 0.0
  %600 = vmatpush2.msra.mxu0 0.0
  %601 = vmatprep.subr.mxu0 0.0
  %602 = vmatpush2.msra.mxu0 0.0
  %603 = vmatprep.subr.mxu0 0.0
  %604 = vmatpush2.msra.mxu0 0.0
  %605 = vmatprep.subr.mxu0 0.0
  %606 = vmatpush2.msra.mxu0 0.0
  %607 = vmatprep.subr.mxu0 0.0
  %608 = vmatpush2.msra.mxu0 0.0
  %609 = vmatprep.subr.mxu0 0.0
  %610 = vmatpush2.msra.mxu0 0.0
  %611 = vmatprep.mubr.f32.mxu0 0.0
  %612 = vmatmul.mubr.f32.gmra.mxu0 %v474
  %v613 = vpop.f32.mrf.mxu0
  %v614 = vadd.f32 0.0, %v613
  %v615 = vpop.f32.mrf.mxu0
  %616 = vdwg.mxu0
  %617 = vmatprep.subr.mxu0 0.0
  %618 = vmatpush1.msra.mxu0 0.0
  %619 = vmatprep.subr.mxu0 0.0
  %620 = vmatpush1.msra.mxu0 0.0
  %621 = vmatprep.subr.mxu0 0.0
  %622 = vmatpush1.msra.mxu0 0.0
  %623 = vmatprep.subr.mxu0 0.0
  %624 = vmatpush1.msra.mxu0 0.0
  %625 = vmatprep.subr.mxu0 0.0
  %626 = vmatpush1.msra.mxu0 0.0
  %627 = vmatprep.subr.mxu0 0.0
  %628 = vmatpush1.msra.mxu0 0.0
  %629 = vmatprep.subr.mxu0 0.0
  %630 = vmatpush1.msra.mxu0 0.0
  %631 = vmatprep.subr.mxu0 0.0
  %632 = vmatpush1.msra.mxu0 0.0
  %633 = vmatprep.subr.mxu0 0.0
  %634 = vmatpush1.msra.mxu0 0.0
  %635 = vmatprep.subr.mxu0 0.0
  %636 = vmatpush1.msra.mxu0 0.0
  %637 = vmatprep.subr.mxu0 0.0
  %638 = vmatpush1.msra.mxu0 %v398
  %639 = vmatprep.subr.mxu0 0.0
  %640 = vmatpush1.msra.mxu0 %v397
  %641 = vmatprep.subr.mxu0 0.0
  %642 = vmatpush1.msra.mxu0 %v396
  %643 = vmatprep.subr.mxu0 0.0
  %644 = vmatpush1.msra.mxu0 %v395
  %645 = vmatprep.subr.mxu0 0.0
  %646 = vmatpush1.msra.mxu0 %v394
  %647 = vmatprep.subr.mxu0 0.0
  %648 = vmatpush1.msra.mxu0 %v393
  %649 = vmatprep.subr.mxu0 0.0
  %650 = vmatpush2.msra.mxu0 0.0
  %651 = vmatprep.subr.mxu0 0.0
  %652 = vmatpush2.msra.mxu0 0.0
  %653 = vmatprep.subr.mxu0 0.0
  %654 = vmatpush2.msra.mxu0 0.0
  %655 = vmatprep.subr.mxu0 0.0
  %656 = vmatpush2.msra.mxu0 0.0
  %657 = vmatprep.subr.mxu0 0.0
  %658 = vmatpush2.msra.mxu0 0.0
  %659 = vmatprep.subr.mxu0 0.0
  %660 = vmatpush2.msra.mxu0 0.0
  %661 = vmatprep.subr.mxu0 0.0
  %662 = vmatpush2.msra.mxu0 0.0
  %663 = vmatprep.subr.mxu0 0.0
  %664 = vmatpush2.msra.mxu0 0.0
  %665 = vmatprep.subr.mxu0 0.0
  %666 = vmatpush2.msra.mxu0 0.0
  %667 = vmatprep.subr.mxu0 0.0
  %668 = vmatpush2.msra.mxu0 0.0
  %669 = vmatprep.subr.mxu0 0.0
  %670 = vmatpush2.msra.mxu0 0.0
  %671 = vmatprep.subr.mxu0 0.0
  %672 = vmatpush2.msra.mxu0 0.0
  %673 = vmatprep.subr.mxu0 0.0
  %674 = vmatpush2.msra.mxu0 0.0
  %675 = vmatprep.subr.mxu0 0.0
  %676 = vmatpush2.msra.mxu0 0.0
  %677 = vmatprep.subr.mxu0 0.0
  %678 = vmatpush2.msra.mxu0 0.0
  %679 = vmatprep.subr.mxu0 0.0
  %680 = vmatpush2.msra.mxu0 0.0
  %681 = vmatprep.mubr.f32.mxu0 0.0
  %682 = vmatmul.mubr.f32.gmra.mxu0 %v401
  %v683 = vpop.f32.mrf.mxu0
  %v684 = vadd.f32 %v614, %v683
  %v685 = vpop.f32.mrf.mxu0
  %686 = vdwg.mxu0
  %v687 = vsub.f32 0.0, %v684
  %v688 = vmul.f32 %v57, %v57
  %v689 = vmul.f32 %v58, %v58
  %v690 = vadd.f32 %v688, %v689
  %v691 = vadd.f32 %v690, 1e-08
  %v692 = vrsqrt.pop %v691
  %v693 = vmul.f32 %v691, %v692
  %vm694 = vcmp.eq.f32.partialorder %v691, inf
  %v695 = vsel %vm694, %v691, %v693
  %vm696 = vcmp.eq.f32.partialorder %v691, 0.0
  %v697 = vand.u32 %v691, 2147483648
  %v698 = vsel %vm696, %v697, %v695
  %v699 = vmul.f32 %v546, %v546
  %v700 = vmul.f32 %v687, %v687
  %v701 = vadd.f32 %v699, %v700
  %v702 = vadd.f32 %v701, 1e-08
  %v703 = vrsqrt.pop %v702
  %v704 = vmul.f32 %v702, %v703
  %vm705 = vcmp.eq.f32.partialorder %v702, inf
  %v706 = vsel %vm705, %v702, %v704
  %vm707 = vcmp.eq.f32.partialorder %v702, 0.0
  %v708 = vand.u32 %v702, 2147483648
  %v709 = vsel %vm707, %v708, %v706
  %v710 = vsub.f32 %v698, %v709
  %v711 = vand.u32 2147483647, %v710
  %v712 = vsel %vm399, %v711, 0.0
  %713 = vadd.xlane.f32.xlu0 %v712
  %v714 = vpop.xlane.xlu0 %713
  %v715 = vrot.slane %v714, 4
  %v716 = vadd.f32 %v714, %v715
  %v717 = vrot.slane %v716, 2
  %v718 = vadd.f32 %v716, %v717
  %v719 = vrot.slane %v718, 1
  %v720 = vadd.f32 %v718, %v719
  %v721 = vadd.f32 %v57, 1e-08
  %v722 = vadd.f32 %v546, 1e-08
  %v723 = vmul.f32 %v721, %v721
  %v724 = vadd.f32 %v723, %v689
  %v725 = vrsqrt.pop %v724
  %v726 = vmul.f32 %v724, %v725
  %vm727 = vcmp.eq.f32.partialorder %v724, inf
  %v728 = vsel %vm727, %v724, %v726
  %vm729 = vcmp.eq.f32.partialorder %v724, 0.0
  %v730 = vand.u32 %v724, 2147483648
  %v731 = vsel %vm729, %v730, %v728
  %v732 = vmul.f32 %v722, %v722
  %v733 = vadd.f32 %v732, %v700
  %v734 = vrsqrt.pop %v733
  %v735 = vmul.f32 %v733, %v734
  %vm736 = vcmp.eq.f32.partialorder %v733, inf
  %v737 = vsel %vm736, %v733, %v735
  %vm738 = vcmp.eq.f32.partialorder %v733, 0.0
  %v739 = vand.u32 %v733, 2147483648
  %v740 = vsel %vm738, %v739, %v737
  %v741 = vmul.f32 %v721, %v722
  %v742 = vmul.f32 %v58, %v687
  %v743 = vadd.f32 %v741, %v742
  %v744 = vmul.f32 %v731, %v740
  %v745 = vrcp.pop %v744
  %v746 = vmul.f32 %v743, %v745
  %v747 = vsub.f32 1.0, %v746
  %v748 = vsel %vm399, %v747, 0.0
  %749 = vadd.xlane.f32.xlu0 %v748
  %v750 = vpop.xlane.xlu0 %749
  %v751 = vrot.slane %v750, 4
  %v752 = vadd.f32 %v750, %v751
  %v753 = vrot.slane %v752, 2
  %v754 = vadd.f32 %v752, %v753
  %v755 = vrot.slane %v754, 1
  %v756 = vadd.f32 %v754, %v755
  %v757 = vand.u32 2147483647, %v67
  %v758 = vand.u32 2147483647, %v68
  %v759 = vsel %vm82, %v757, 0.0
  %760 = vadd.xlane.f32.xlu0 %v759
  %v761 = vpop.xlane.xlu0 %760
  %v762 = vsel %vm82, %v758, 0.0
  %763 = vadd.xlane.f32.xlu0 %v762
  %v764 = vpop.xlane.xlu0 %763
  %v765 = vadd.f32 %v761, %v764
  %v766 = vrot.slane %v765, 4
  %v767 = vadd.f32 %v765, %v766
  %v768 = vrot.slane %v767, 2
  %v769 = vadd.f32 %v767, %v768
  %v770 = vrot.slane %v769, 1
  %v771 = vadd.f32 %v769, %v770
  %v772 = vld [vmem:[%s10] sm:$0x3f]
  %v773 = vld [vmem:[%s11] sm:$0xff]
  %v774 = vld [vmem:[%s11 + $0x8] sm:$0xff]
  %v775 = vld [vmem:[%s11 + $0x10] sm:$0xff]
  %v776 = vld [vmem:[%s11 + $0x18] sm:$0xff]
  %v777 = vld [vmem:[%s11 + $0x20] sm:$0xff]
  %v778 = vld [vmem:[%s11 + $0x28] sm:$0xff]
  %v779 = vld [vmem:[%s11 + $0x30] sm:$0xff]
  %v780 = vld [vmem:[%s11 + $0x38] sm:$0xff]
  %v781 = vld [vmem:[%s11 + $0x40] sm:$0xff]
  %v782 = vld [vmem:[%s11 + $0x48] sm:$0xff]
  %v783 = vld [vmem:[%s11 + $0x50] sm:$0xff]
  %v784 = vld [vmem:[%s11 + $0x58] sm:$0xff]
  %v786 = vsel %vm82, %v61, 0
  %v789 = vsel %vm82, %v62, 0
  %791 = vmatprep.subr.mxu0 0.0
  %792 = vmatpush1.msra.mxu0 0.0
  %793 = vmatprep.subr.mxu0 0.0
  %794 = vmatpush1.msra.mxu0 0.0
  %795 = vmatprep.subr.mxu0 0.0
  %796 = vmatpush1.msra.mxu0 0.0
  %797 = vmatprep.subr.mxu0 0.0
  %798 = vmatpush1.msra.mxu0 0.0
  %799 = vmatprep.subr.mxu0 0.0
  %800 = vmatpush1.msra.mxu0 %v784
  %801 = vmatprep.subr.mxu0 0.0
  %802 = vmatpush1.msra.mxu0 %v783
  %803 = vmatprep.subr.mxu0 0.0
  %804 = vmatpush1.msra.mxu0 %v782
  %805 = vmatprep.subr.mxu0 0.0
  %806 = vmatpush1.msra.mxu0 %v781
  %807 = vmatprep.subr.mxu0 0.0
  %808 = vmatpush1.msra.mxu0 %v780
  %809 = vmatprep.subr.mxu0 0.0
  %810 = vmatpush1.msra.mxu0 %v779
  %811 = vmatprep.subr.mxu0 0.0
  %812 = vmatpush1.msra.mxu0 %v778
  %813 = vmatprep.subr.mxu0 0.0
  %814 = vmatpush1.msra.mxu0 %v777
  %815 = vmatprep.subr.mxu0 0.0
  %816 = vmatpush1.msra.mxu0 %v776
  %817 = vmatprep.subr.mxu0 0.0
  %818 = vmatpush1.msra.mxu0 %v775
  %819 = vmatprep.subr.mxu0 0.0
  %820 = vmatpush1.msra.mxu0 %v774
  %821 = vmatprep.subr.mxu0 0.0
  %822 = vmatpush1.msra.mxu0 %v773
  %823 = vmatprep.subr.mxu0 0.0
  %824 = vmatpush2.msra.mxu0 0.0
  %825 = vmatprep.subr.mxu0 0.0
  %826 = vmatpush2.msra.mxu0 0.0
  %827 = vmatprep.subr.mxu0 0.0
  %828 = vmatpush2.msra.mxu0 0.0
  %829 = vmatprep.subr.mxu0 0.0
  %830 = vmatpush2.msra.mxu0 0.0
  %831 = vmatprep.subr.mxu0 0.0
  %832 = vmatpush2.msra.mxu0 0.0
  %833 = vmatprep.subr.mxu0 0.0
  %834 = vmatpush2.msra.mxu0 0.0
  %835 = vmatprep.subr.mxu0 0.0
  %836 = vmatpush2.msra.mxu0 0.0
  %837 = vmatprep.subr.mxu0 0.0
  %838 = vmatpush2.msra.mxu0 0.0
  %839 = vmatprep.subr.mxu0 0.0
  %840 = vmatpush2.msra.mxu0 0.0
  %841 = vmatprep.subr.mxu0 0.0
  %842 = vmatpush2.msra.mxu0 0.0
  %843 = vmatprep.subr.mxu0 0.0
  %844 = vmatpush2.msra.mxu0 0.0
  %845 = vmatprep.subr.mxu0 0.0
  %846 = vmatpush2.msra.mxu0 0.0
  %847 = vmatprep.subr.mxu0 0.0
  %848 = vmatpush2.msra.mxu0 0.0
  %849 = vmatprep.subr.mxu0 0.0
  %850 = vmatpush2.msra.mxu0 0.0
  %851 = vmatprep.subr.mxu0 0.0
  %852 = vmatpush2.msra.mxu0 0.0
  %853 = vmatprep.subr.mxu0 0.0
  %854 = vmatpush2.msra.mxu0 0.0
  %855 = vmatprep.mubr.f32.mxu0 0.0
  %856 = vmatmul.mubr.f32.gmra.mxu0 %v786
  %v857 = vpop.f32.mrf.mxu0
  %v858 = vadd.f32 0.0, %v857
  %v859 = vpop.f32.mrf.mxu0
  %860 = vmatprep.mubr.f32.mxu0 0.0
  %861 = vmatmul.mubr.f32.gmra.mxu0 %v789
  %v862 = vpop.f32.mrf.mxu0
  %v863 = vadd.f32 0.0, %v862
  %v864 = vpop.f32.mrf.mxu0
  %865 = vdwg.mxu0
  %v867 = vsel %vm164, %v772, 0
  %869 = vmatprep.subr.mxu0 0.0
  %870 = vmatpush1.msra.mxu0 0.0
  %871 = vmatprep.subr.mxu0 0.0
  %872 = vmatpush1.msra.mxu0 0.0
  %873 = vmatprep.subr.mxu0 0.0
  %874 = vmatpush1.msra.mxu0 0.0
  %875 = vmatprep.subr.mxu0 0.0
  %876 = vmatpush1.msra.mxu0 0.0
  %877 = vmatprep.subr.mxu0 0.0
  %878 = vmatpush1.msra.mxu0 0.0
  %879 = vmatprep.subr.mxu0 0.0
  %880 = vmatpush1.msra.mxu0 0.0
  %881 = vmatprep.subr.mxu0 0.0
  %882 = vmatpush1.msra.mxu0 0.0
  %883 = vmatprep.subr.mxu0 0.0
  %884 = vmatpush1.msra.mxu0 0.0
  %885 = vmatprep.subr.mxu0 0.0
  %886 = vmatpush1.msra.mxu0 0.0
  %887 = vmatprep.subr.mxu0 0.0
  %888 = vmatpush1.msra.mxu0 0.0
  %889 = vmatprep.subr.mxu0 0.0
  %890 = vmatpush1.msra.mxu0 0.0
  %891 = vmatprep.subr.mxu0 0.0
  %892 = vmatpush1.msra.mxu0 0.0
  %893 = vmatprep.subr.mxu0 0.0
  %894 = vmatpush1.msra.mxu0 0.0
  %895 = vmatprep.subr.mxu0 0.0
  %896 = vmatpush1.msra.mxu0 0.0
  %897 = vmatprep.subr.mxu0 0.0
  %898 = vmatpush1.msra.mxu0 %v863
  %899 = vmatprep.subr.mxu0 0.0
  %900 = vmatpush1.msra.mxu0 %v858
  %901 = vmatprep.subr.mxu0 0.0
  %902 = vmatpush2.msra.mxu0 0.0
  %903 = vmatprep.subr.mxu0 0.0
  %904 = vmatpush2.msra.mxu0 0.0
  %905 = vmatprep.subr.mxu0 0.0
  %906 = vmatpush2.msra.mxu0 0.0
  %907 = vmatprep.subr.mxu0 0.0
  %908 = vmatpush2.msra.mxu0 0.0
  %909 = vmatprep.subr.mxu0 0.0
  %910 = vmatpush2.msra.mxu0 0.0
  %911 = vmatprep.subr.mxu0 0.0
  %912 = vmatpush2.msra.mxu0 0.0
  %913 = vmatprep.subr.mxu0 0.0
  %914 = vmatpush2.msra.mxu0 0.0
  %915 = vmatprep.subr.mxu0 0.0
  %916 = vmatpush2.msra.mxu0 0.0
  %917 = vmatprep.subr.mxu0 0.0
  %918 = vmatpush2.msra.mxu0 0.0
  %919 = vmatprep.subr.mxu0 0.0
  %920 = vmatpush2.msra.mxu0 0.0
  %921 = vmatprep.subr.mxu0 0.0
  %922 = vmatpush2.msra.mxu0 0.0
  %923 = vmatprep.subr.mxu0 0.0
  %924 = vmatpush2.msra.mxu0 0.0
  %925 = vmatprep.subr.mxu0 0.0
  %926 = vmatpush2.msra.mxu0 0.0
  %927 = vmatprep.subr.mxu0 0.0
  %928 = vmatpush2.msra.mxu0 0.0
  %929 = vmatprep.subr.mxu0 0.0
  %930 = vmatpush2.msra.mxu0 0.0
  %931 = vmatprep.subr.mxu0 0.0
  %932 = vmatpush2.msra.mxu0 0.0
  %933 = vmatprep.mubr.f32.mxu0 0.0
  %934 = vmatmul.mubr.f32.gmra.mxu0 %v867
  %v935 = vpop.f32.mrf.mxu0
  %v936 = vadd.f32 0.0, %v935
  %v937 = vpop.f32.mrf.mxu0
  %938 = vdwg.mxu0
  %v940 = vsel %vm82, %v65, 0
  %v943 = vsel %vm82, %v66, 0
  %945 = vmatprep.subr.mxu0 0.0
  %946 = vmatpush1.msra.mxu0 0.0
  %947 = vmatprep.subr.mxu0 0.0
  %948 = vmatpush1.msra.mxu0 0.0
  %949 = vmatprep.subr.mxu0 0.0
  %950 = vmatpush1.msra.mxu0 0.0
  %951 = vmatprep.subr.mxu0 0.0
  %952 = vmatpush1.msra.mxu0 0.0
  %953 = vmatprep.subr.mxu0 0.0
  %954 = vmatpush1.msra.mxu0 %v784
  %955 = vmatprep.subr.mxu0 0.0
  %956 = vmatpush1.msra.mxu0 %v783
  %957 = vmatprep.subr.mxu0 0.0
  %958 = vmatpush1.msra.mxu0 %v782
  %959 = vmatprep.subr.mxu0 0.0
  %960 = vmatpush1.msra.mxu0 %v781
  %961 = vmatprep.subr.mxu0 0.0
  %962 = vmatpush1.msra.mxu0 %v780
  %963 = vmatprep.subr.mxu0 0.0
  %964 = vmatpush1.msra.mxu0 %v779
  %965 = vmatprep.subr.mxu0 0.0
  %966 = vmatpush1.msra.mxu0 %v778
  %967 = vmatprep.subr.mxu0 0.0
  %968 = vmatpush1.msra.mxu0 %v777
  %969 = vmatprep.subr.mxu0 0.0
  %970 = vmatpush1.msra.mxu0 %v776
  %971 = vmatprep.subr.mxu0 0.0
  %972 = vmatpush1.msra.mxu0 %v775
  %973 = vmatprep.subr.mxu0 0.0
  %974 = vmatpush1.msra.mxu0 %v774
  %975 = vmatprep.subr.mxu0 0.0
  %976 = vmatpush1.msra.mxu0 %v773
  %977 = vmatprep.subr.mxu0 0.0
  %978 = vmatpush2.msra.mxu0 0.0
  %979 = vmatprep.subr.mxu0 0.0
  %980 = vmatpush2.msra.mxu0 0.0
  %981 = vmatprep.subr.mxu0 0.0
  %982 = vmatpush2.msra.mxu0 0.0
  %983 = vmatprep.subr.mxu0 0.0
  %984 = vmatpush2.msra.mxu0 0.0
  %985 = vmatprep.subr.mxu0 0.0
  %986 = vmatpush2.msra.mxu0 0.0
  %987 = vmatprep.subr.mxu0 0.0
  %988 = vmatpush2.msra.mxu0 0.0
  %989 = vmatprep.subr.mxu0 0.0
  %990 = vmatpush2.msra.mxu0 0.0
  %991 = vmatprep.subr.mxu0 0.0
  %992 = vmatpush2.msra.mxu0 0.0
  %993 = vmatprep.subr.mxu0 0.0
  %994 = vmatpush2.msra.mxu0 0.0
  %995 = vmatprep.subr.mxu0 0.0
  %996 = vmatpush2.msra.mxu0 0.0
  %997 = vmatprep.subr.mxu0 0.0
  %998 = vmatpush2.msra.mxu0 0.0
  %999 = vmatprep.subr.mxu0 0.0
  %1000 = vmatpush2.msra.mxu0 0.0
  %1001 = vmatprep.subr.mxu0 0.0
  %1002 = vmatpush2.msra.mxu0 0.0
  %1003 = vmatprep.subr.mxu0 0.0
  %1004 = vmatpush2.msra.mxu0 0.0
  %1005 = vmatprep.subr.mxu0 0.0
  %1006 = vmatpush2.msra.mxu0 0.0
  %1007 = vmatprep.subr.mxu0 0.0
  %1008 = vmatpush2.msra.mxu0 0.0
  %1009 = vmatprep.mubr.f32.mxu0 0.0
  %1010 = vmatmul.mubr.f32.gmra.mxu0 %v940
  %v1011 = vpop.f32.mrf.mxu0
  %v1012 = vadd.f32 0.0, %v1011
  %v1013 = vpop.f32.mrf.mxu0
  %1014 = vmatprep.mubr.f32.mxu0 0.0
  %1015 = vmatmul.mubr.f32.gmra.mxu0 %v943
  %v1016 = vpop.f32.mrf.mxu0
  %v1017 = vadd.f32 0.0, %v1016
  %v1018 = vpop.f32.mrf.mxu0
  %1019 = vdwg.mxu0
  %1020 = vmatprep.subr.mxu0 0.0
  %1021 = vmatpush1.msra.mxu0 0.0
  %1022 = vmatprep.subr.mxu0 0.0
  %1023 = vmatpush1.msra.mxu0 0.0
  %1024 = vmatprep.subr.mxu0 0.0
  %1025 = vmatpush1.msra.mxu0 0.0
  %1026 = vmatprep.subr.mxu0 0.0
  %1027 = vmatpush1.msra.mxu0 0.0
  %1028 = vmatprep.subr.mxu0 0.0
  %1029 = vmatpush1.msra.mxu0 0.0
  %1030 = vmatprep.subr.mxu0 0.0
  %1031 = vmatpush1.msra.mxu0 0.0
  %1032 = vmatprep.subr.mxu0 0.0
  %1033 = vmatpush1.msra.mxu0 0.0
  %1034 = vmatprep.subr.mxu0 0.0
  %1035 = vmatpush1.msra.mxu0 0.0
  %1036 = vmatprep.subr.mxu0 0.0
  %1037 = vmatpush1.msra.mxu0 0.0
  %1038 = vmatprep.subr.mxu0 0.0
  %1039 = vmatpush1.msra.mxu0 0.0
  %1040 = vmatprep.subr.mxu0 0.0
  %1041 = vmatpush1.msra.mxu0 0.0
  %1042 = vmatprep.subr.mxu0 0.0
  %1043 = vmatpush1.msra.mxu0 0.0
  %1044 = vmatprep.subr.mxu0 0.0
  %1045 = vmatpush1.msra.mxu0 0.0
  %1046 = vmatprep.subr.mxu0 0.0
  %1047 = vmatpush1.msra.mxu0 0.0
  %1048 = vmatprep.subr.mxu0 0.0
  %1049 = vmatpush1.msra.mxu0 %v1017
  %1050 = vmatprep.subr.mxu0 0.0
  %1051 = vmatpush1.msra.mxu0 %v1012
  %1052 = vmatprep.subr.mxu0 0.0
  %1053 = vmatpush2.msra.mxu0 0.0
  %1054 = vmatprep.subr.mxu0 0.0
  %1055 = vmatpush2.msra.mxu0 0.0
  %1056 = vmatprep.subr.mxu0 0.0
  %1057 = vmatpush2.msra.mxu0 0.0
  %1058 = vmatprep.subr.mxu0 0.0
  %1059 = vmatpush2.msra.mxu0 0.0
  %1060 = vmatprep.subr.mxu0 0.0
  %1061 = vmatpush2.msra.mxu0 0.0
  %1062 = vmatprep.subr.mxu0 0.0
  %1063 = vmatpush2.msra.mxu0 0.0
  %1064 = vmatprep.subr.mxu0 0.0
  %1065 = vmatpush2.msra.mxu0 0.0
  %1066 = vmatprep.subr.mxu0 0.0
  %1067 = vmatpush2.msra.mxu0 0.0
  %1068 = vmatprep.subr.mxu0 0.0
  %1069 = vmatpush2.msra.mxu0 0.0
  %1070 = vmatprep.subr.mxu0 0.0
  %1071 = vmatpush2.msra.mxu0 0.0
  %1072 = vmatprep.subr.mxu0 0.0
  %1073 = vmatpush2.msra.mxu0 0.0
  %1074 = vmatprep.subr.mxu0 0.0
  %1075 = vmatpush2.msra.mxu0 0.0
  %1076 = vmatprep.subr.mxu0 0.0
  %1077 = vmatpush2.msra.mxu0 0.0
  %1078 = vmatprep.subr.mxu0 0.0
  %1079 = vmatpush2.msra.mxu0 0.0
  %1080 = vmatprep.subr.mxu0 0.0
  %1081 = vmatpush2.msra.mxu0 0.0
  %1082 = vmatprep.subr.mxu0 0.0
  %1083 = vmatpush2.msra.mxu0 0.0
  %1084 = vmatprep.mubr.f32.mxu0 0.0
  %1085 = vmatmul.mubr.f32.gmra.mxu0 %v867
  %v1086 = vpop.f32.mrf.mxu0
  %v1087 = vadd.f32 0.0, %v1086
  %v1088 = vpop.f32.mrf.mxu0
  %1089 = vdwg.mxu0
  %v1090 = vmul.f32 %v61, %v61
  %v1091 = vmul.f32 %v62, %v62
  %v1093 = vsel %vm82, %v1090, 0
  %v1096 = vsel %vm82, %v1091, 0
  %1098 = vmatprep.subr.mxu0 0.0
  %1099 = vmatpush1.msra.mxu0 0.0
  %1100 = vmatprep.subr.mxu0 0.0
  %1101 = vmatpush1.msra.mxu0 0.0
  %1102 = vmatprep.subr.mxu0 0.0
  %1103 = vmatpush1.msra.mxu0 0.0
  %1104 = vmatprep.subr.mxu0 0.0
  %1105 = vmatpush1.msra.mxu0 0.0
  %1106 = vmatprep.subr.mxu0 0.0
  %1107 = vmatpush1.msra.mxu0 %v784
  %1108 = vmatprep.subr.mxu0 0.0
  %1109 = vmatpush1.msra.mxu0 %v783
  %1110 = vmatprep.subr.mxu0 0.0
  %1111 = vmatpush1.msra.mxu0 %v782
  %1112 = vmatprep.subr.mxu0 0.0
  %1113 = vmatpush1.msra.mxu0 %v781
  %1114 = vmatprep.subr.mxu0 0.0
  %1115 = vmatpush1.msra.mxu0 %v780
  %1116 = vmatprep.subr.mxu0 0.0
  %1117 = vmatpush1.msra.mxu0 %v779
  %1118 = vmatprep.subr.mxu0 0.0
  %1119 = vmatpush1.msra.mxu0 %v778
  %1120 = vmatprep.subr.mxu0 0.0
  %1121 = vmatpush1.msra.mxu0 %v777
  %1122 = vmatprep.subr.mxu0 0.0
  %1123 = vmatpush1.msra.mxu0 %v776
  %1124 = vmatprep.subr.mxu0 0.0
  %1125 = vmatpush1.msra.mxu0 %v775
  %1126 = vmatprep.subr.mxu0 0.0
  %1127 = vmatpush1.msra.mxu0 %v774
  %1128 = vmatprep.subr.mxu0 0.0
  %1129 = vmatpush1.msra.mxu0 %v773
  %1130 = vmatprep.subr.mxu0 0.0
  %1131 = vmatpush2.msra.mxu0 0.0
  %1132 = vmatprep.subr.mxu0 0.0
  %1133 = vmatpush2.msra.mxu0 0.0
  %1134 = vmatprep.subr.mxu0 0.0
  %1135 = vmatpush2.msra.mxu0 0.0
  %1136 = vmatprep.subr.mxu0 0.0
  %1137 = vmatpush2.msra.mxu0 0.0
  %1138 = vmatprep.subr.mxu0 0.0
  %1139 = vmatpush2.msra.mxu0 0.0
  %1140 = vmatprep.subr.mxu0 0.0
  %1141 = vmatpush2.msra.mxu0 0.0
  %1142 = vmatprep.subr.mxu0 0.0
  %1143 = vmatpush2.msra.mxu0 0.0
  %1144 = vmatprep.subr.mxu0 0.0
  %1145 = vmatpush2.msra.mxu0 0.0
  %1146 = vmatprep.subr.mxu0 0.0
  %1147 = vmatpush2.msra.mxu0 0.0
  %1148 = vmatprep.subr.mxu0 0.0
  %1149 = vmatpush2.msra.mxu0 0.0
  %1150 = vmatprep.subr.mxu0 0.0
  %1151 = vmatpush2.msra.mxu0 0.0
  %1152 = vmatprep.subr.mxu0 0.0
  %1153 = vmatpush2.msra.mxu0 0.0
  %1154 = vmatprep.subr.mxu0 0.0
  %1155 = vmatpush2.msra.mxu0 0.0
  %1156 = vmatprep.subr.mxu0 0.0
  %1157 = vmatpush2.msra.mxu0 0.0
  %1158 = vmatprep.subr.mxu0 0.0
  %1159 = vmatpush2.msra.mxu0 0.0
  %1160 = vmatprep.subr.mxu0 0.0
  %1161 = vmatpush2.msra.mxu0 0.0
  %1162 = vmatprep.mubr.f32.mxu0 0.0
  %1163 = vmatmul.mubr.f32.gmra.mxu0 %v1093
  %v1164 = vpop.f32.mrf.mxu0
  %v1165 = vadd.f32 0.0, %v1164
  %v1166 = vpop.f32.mrf.mxu0
  %1167 = vmatprep.mubr.f32.mxu0 0.0
  %1168 = vmatmul.mubr.f32.gmra.mxu0 %v1096
  %v1169 = vpop.f32.mrf.mxu0
  %v1170 = vadd.f32 0.0, %v1169
  %v1171 = vpop.f32.mrf.mxu0
  %1172 = vdwg.mxu0
  %1173 = vmatprep.subr.mxu0 0.0
  %1174 = vmatpush1.msra.mxu0 0.0
  %1175 = vmatprep.subr.mxu0 0.0
  %1176 = vmatpush1.msra.mxu0 0.0
  %1177 = vmatprep.subr.mxu0 0.0
  %1178 = vmatpush1.msra.mxu0 0.0
  %1179 = vmatprep.subr.mxu0 0.0
  %1180 = vmatpush1.msra.mxu0 0.0
  %1181 = vmatprep.subr.mxu0 0.0
  %1182 = vmatpush1.msra.mxu0 0.0
  %1183 = vmatprep.subr.mxu0 0.0
  %1184 = vmatpush1.msra.mxu0 0.0
  %1185 = vmatprep.subr.mxu0 0.0
  %1186 = vmatpush1.msra.mxu0 0.0
  %1187 = vmatprep.subr.mxu0 0.0
  %1188 = vmatpush1.msra.mxu0 0.0
  %1189 = vmatprep.subr.mxu0 0.0
  %1190 = vmatpush1.msra.mxu0 0.0
  %1191 = vmatprep.subr.mxu0 0.0
  %1192 = vmatpush1.msra.mxu0 0.0
  %1193 = vmatprep.subr.mxu0 0.0
  %1194 = vmatpush1.msra.mxu0 0.0
  %1195 = vmatprep.subr.mxu0 0.0
  %1196 = vmatpush1.msra.mxu0 0.0
  %1197 = vmatprep.subr.mxu0 0.0
  %1198 = vmatpush1.msra.mxu0 0.0
  %1199 = vmatprep.subr.mxu0 0.0
  %1200 = vmatpush1.msra.mxu0 0.0
  %1201 = vmatprep.subr.mxu0 0.0
  %1202 = vmatpush1.msra.mxu0 %v1170
  %1203 = vmatprep.subr.mxu0 0.0
  %1204 = vmatpush1.msra.mxu0 %v1165
  %1205 = vmatprep.subr.mxu0 0.0
  %1206 = vmatpush2.msra.mxu0 0.0
  %1207 = vmatprep.subr.mxu0 0.0
  %1208 = vmatpush2.msra.mxu0 0.0
  %1209 = vmatprep.subr.mxu0 0.0
  %1210 = vmatpush2.msra.mxu0 0.0
  %1211 = vmatprep.subr.mxu0 0.0
  %1212 = vmatpush2.msra.mxu0 0.0
  %1213 = vmatprep.subr.mxu0 0.0
  %1214 = vmatpush2.msra.mxu0 0.0
  %1215 = vmatprep.subr.mxu0 0.0
  %1216 = vmatpush2.msra.mxu0 0.0
  %1217 = vmatprep.subr.mxu0 0.0
  %1218 = vmatpush2.msra.mxu0 0.0
  %1219 = vmatprep.subr.mxu0 0.0
  %1220 = vmatpush2.msra.mxu0 0.0
  %1221 = vmatprep.subr.mxu0 0.0
  %1222 = vmatpush2.msra.mxu0 0.0
  %1223 = vmatprep.subr.mxu0 0.0
  %1224 = vmatpush2.msra.mxu0 0.0
  %1225 = vmatprep.subr.mxu0 0.0
  %1226 = vmatpush2.msra.mxu0 0.0
  %1227 = vmatprep.subr.mxu0 0.0
  %1228 = vmatpush2.msra.mxu0 0.0
  %1229 = vmatprep.subr.mxu0 0.0
  %1230 = vmatpush2.msra.mxu0 0.0
  %1231 = vmatprep.subr.mxu0 0.0
  %1232 = vmatpush2.msra.mxu0 0.0
  %1233 = vmatprep.subr.mxu0 0.0
  %1234 = vmatpush2.msra.mxu0 0.0
  %1235 = vmatprep.subr.mxu0 0.0
  %1236 = vmatpush2.msra.mxu0 0.0
  %1237 = vmatprep.mubr.f32.mxu0 0.0
  %1238 = vmatmul.mubr.f32.gmra.mxu0 %v867
  %v1239 = vpop.f32.mrf.mxu0
  %v1240 = vadd.f32 0.0, %v1239
  %v1241 = vpop.f32.mrf.mxu0
  %1242 = vdwg.mxu0
  %v1243 = vmul.f32 %v936, %v936
  %v1244 = vsub.f32 %v1240, %v1243
  %v1245 = vmul.f32 %v65, %v65
  %v1246 = vmul.f32 %v66, %v66
  %v1248 = vsel %vm82, %v1245, 0
  %v1251 = vsel %vm82, %v1246, 0
  %1253 = vmatprep.subr.mxu0 0.0
  %1254 = vmatpush1.msra.mxu0 0.0
  %1255 = vmatprep.subr.mxu0 0.0
  %1256 = vmatpush1.msra.mxu0 0.0
  %1257 = vmatprep.subr.mxu0 0.0
  %1258 = vmatpush1.msra.mxu0 0.0
  %1259 = vmatprep.subr.mxu0 0.0
  %1260 = vmatpush1.msra.mxu0 0.0
  %1261 = vmatprep.subr.mxu0 0.0
  %1262 = vmatpush1.msra.mxu0 %v784
  %1263 = vmatprep.subr.mxu0 0.0
  %1264 = vmatpush1.msra.mxu0 %v783
  %1265 = vmatprep.subr.mxu0 0.0
  %1266 = vmatpush1.msra.mxu0 %v782
  %1267 = vmatprep.subr.mxu0 0.0
  %1268 = vmatpush1.msra.mxu0 %v781
  %1269 = vmatprep.subr.mxu0 0.0
  %1270 = vmatpush1.msra.mxu0 %v780
  %1271 = vmatprep.subr.mxu0 0.0
  %1272 = vmatpush1.msra.mxu0 %v779
  %1273 = vmatprep.subr.mxu0 0.0
  %1274 = vmatpush1.msra.mxu0 %v778
  %1275 = vmatprep.subr.mxu0 0.0
  %1276 = vmatpush1.msra.mxu0 %v777
  %1277 = vmatprep.subr.mxu0 0.0
  %1278 = vmatpush1.msra.mxu0 %v776
  %1279 = vmatprep.subr.mxu0 0.0
  %1280 = vmatpush1.msra.mxu0 %v775
  %1281 = vmatprep.subr.mxu0 0.0
  %1282 = vmatpush1.msra.mxu0 %v774
  %1283 = vmatprep.subr.mxu0 0.0
  %1284 = vmatpush1.msra.mxu0 %v773
  %1285 = vmatprep.subr.mxu0 0.0
  %1286 = vmatpush2.msra.mxu0 0.0
  %1287 = vmatprep.subr.mxu0 0.0
  %1288 = vmatpush2.msra.mxu0 0.0
  %1289 = vmatprep.subr.mxu0 0.0
  %1290 = vmatpush2.msra.mxu0 0.0
  %1291 = vmatprep.subr.mxu0 0.0
  %1292 = vmatpush2.msra.mxu0 0.0
  %1293 = vmatprep.subr.mxu0 0.0
  %1294 = vmatpush2.msra.mxu0 0.0
  %1295 = vmatprep.subr.mxu0 0.0
  %1296 = vmatpush2.msra.mxu0 0.0
  %1297 = vmatprep.subr.mxu0 0.0
  %1298 = vmatpush2.msra.mxu0 0.0
  %1299 = vmatprep.subr.mxu0 0.0
  %1300 = vmatpush2.msra.mxu0 0.0
  %1301 = vmatprep.subr.mxu0 0.0
  %1302 = vmatpush2.msra.mxu0 0.0
  %1303 = vmatprep.subr.mxu0 0.0
  %1304 = vmatpush2.msra.mxu0 0.0
  %1305 = vmatprep.subr.mxu0 0.0
  %1306 = vmatpush2.msra.mxu0 0.0
  %1307 = vmatprep.subr.mxu0 0.0
  %1308 = vmatpush2.msra.mxu0 0.0
  %1309 = vmatprep.subr.mxu0 0.0
  %1310 = vmatpush2.msra.mxu0 0.0
  %1311 = vmatprep.subr.mxu0 0.0
  %1312 = vmatpush2.msra.mxu0 0.0
  %1313 = vmatprep.subr.mxu0 0.0
  %1314 = vmatpush2.msra.mxu0 0.0
  %1315 = vmatprep.subr.mxu0 0.0
  %1316 = vmatpush2.msra.mxu0 0.0
  %1317 = vmatprep.mubr.f32.mxu0 0.0
  %1318 = vmatmul.mubr.f32.gmra.mxu0 %v1248
  %v1319 = vpop.f32.mrf.mxu0
  %v1320 = vadd.f32 0.0, %v1319
  %v1321 = vpop.f32.mrf.mxu0
  %1322 = vmatprep.mubr.f32.mxu0 0.0
  %1323 = vmatmul.mubr.f32.gmra.mxu0 %v1251
  %v1324 = vpop.f32.mrf.mxu0
  %v1325 = vadd.f32 0.0, %v1324
  %v1326 = vpop.f32.mrf.mxu0
  %1327 = vdwg.mxu0
  %1328 = vmatprep.subr.mxu0 0.0
  %1329 = vmatpush1.msra.mxu0 0.0
  %1330 = vmatprep.subr.mxu0 0.0
  %1331 = vmatpush1.msra.mxu0 0.0
  %1332 = vmatprep.subr.mxu0 0.0
  %1333 = vmatpush1.msra.mxu0 0.0
  %1334 = vmatprep.subr.mxu0 0.0
  %1335 = vmatpush1.msra.mxu0 0.0
  %1336 = vmatprep.subr.mxu0 0.0
  %1337 = vmatpush1.msra.mxu0 0.0
  %1338 = vmatprep.subr.mxu0 0.0
  %1339 = vmatpush1.msra.mxu0 0.0
  %1340 = vmatprep.subr.mxu0 0.0
  %1341 = vmatpush1.msra.mxu0 0.0
  %1342 = vmatprep.subr.mxu0 0.0
  %1343 = vmatpush1.msra.mxu0 0.0
  %1344 = vmatprep.subr.mxu0 0.0
  %1345 = vmatpush1.msra.mxu0 0.0
  %1346 = vmatprep.subr.mxu0 0.0
  %1347 = vmatpush1.msra.mxu0 0.0
  %1348 = vmatprep.subr.mxu0 0.0
  %1349 = vmatpush1.msra.mxu0 0.0
  %1350 = vmatprep.subr.mxu0 0.0
  %1351 = vmatpush1.msra.mxu0 0.0
  %1352 = vmatprep.subr.mxu0 0.0
  %1353 = vmatpush1.msra.mxu0 0.0
  %1354 = vmatprep.subr.mxu0 0.0
  %1355 = vmatpush1.msra.mxu0 0.0
  %1356 = vmatprep.subr.mxu0 0.0
  %1357 = vmatpush1.msra.mxu0 %v1325
  %1358 = vmatprep.subr.mxu0 0.0
  %1359 = vmatpush1.msra.mxu0 %v1320
  %1360 = vmatprep.subr.mxu0 0.0
  %1361 = vmatpush2.msra.mxu0 0.0
  %1362 = vmatprep.subr.mxu0 0.0
  %1363 = vmatpush2.msra.mxu0 0.0
  %1364 = vmatprep.subr.mxu0 0.0
  %1365 = vmatpush2.msra.mxu0 0.0
  %1366 = vmatprep.subr.mxu0 0.0
  %1367 = vmatpush2.msra.mxu0 0.0
  %1368 = vmatprep.subr.mxu0 0.0
  %1369 = vmatpush2.msra.mxu0 0.0
  %1370 = vmatprep.subr.mxu0 0.0
  %1371 = vmatpush2.msra.mxu0 0.0
  %1372 = vmatprep.subr.mxu0 0.0
  %1373 = vmatpush2.msra.mxu0 0.0
  %1374 = vmatprep.subr.mxu0 0.0
  %1375 = vmatpush2.msra.mxu0 0.0
  %1376 = vmatprep.subr.mxu0 0.0
  %1377 = vmatpush2.msra.mxu0 0.0
  %1378 = vmatprep.subr.mxu0 0.0
  %1379 = vmatpush2.msra.mxu0 0.0
  %1380 = vmatprep.subr.mxu0 0.0
  %1381 = vmatpush2.msra.mxu0 0.0
  %1382 = vmatprep.subr.mxu0 0.0
  %1383 = vmatpush2.msra.mxu0 0.0
  %1384 = vmatprep.subr.mxu0 0.0
  %1385 = vmatpush2.msra.mxu0 0.0
  %1386 = vmatprep.subr.mxu0 0.0
  %1387 = vmatpush2.msra.mxu0 0.0
  %1388 = vmatprep.subr.mxu0 0.0
  %1389 = vmatpush2.msra.mxu0 0.0
  %1390 = vmatprep.subr.mxu0 0.0
  %1391 = vmatpush2.msra.mxu0 0.0
  %1392 = vmatprep.mubr.f32.mxu0 0.0
  %1393 = vmatmul.mubr.f32.gmra.mxu0 %v867
  %v1394 = vpop.f32.mrf.mxu0
  %v1395 = vadd.f32 0.0, %v1394
  %v1396 = vpop.f32.mrf.mxu0
  %1397 = vdwg.mxu0
  %v1398 = vmul.f32 %v1087, %v1087
  %v1399 = vsub.f32 %v1395, %v1398
  %v1400 = vmul.f32 %v61, %v65
  %v1401 = vmul.f32 %v62, %v66
  %v1403 = vsel %vm82, %v1400, 0
  %v1406 = vsel %vm82, %v1401, 0
  %1408 = vmatprep.subr.mxu0 0.0
  %1409 = vmatpush1.msra.mxu0 0.0
  %1410 = vmatprep.subr.mxu0 0.0
  %1411 = vmatpush1.msra.mxu0 0.0
  %1412 = vmatprep.subr.mxu0 0.0
  %1413 = vmatpush1.msra.mxu0 0.0
  %1414 = vmatprep.subr.mxu0 0.0
  %1415 = vmatpush1.msra.mxu0 0.0
  %1416 = vmatprep.subr.mxu0 0.0
  %1417 = vmatpush1.msra.mxu0 %v784
  %1418 = vmatprep.subr.mxu0 0.0
  %1419 = vmatpush1.msra.mxu0 %v783
  %1420 = vmatprep.subr.mxu0 0.0
  %1421 = vmatpush1.msra.mxu0 %v782
  %1422 = vmatprep.subr.mxu0 0.0
  %1423 = vmatpush1.msra.mxu0 %v781
  %1424 = vmatprep.subr.mxu0 0.0
  %1425 = vmatpush1.msra.mxu0 %v780
  %1426 = vmatprep.subr.mxu0 0.0
  %1427 = vmatpush1.msra.mxu0 %v779
  %1428 = vmatprep.subr.mxu0 0.0
  %1429 = vmatpush1.msra.mxu0 %v778
  %1430 = vmatprep.subr.mxu0 0.0
  %1431 = vmatpush1.msra.mxu0 %v777
  %1432 = vmatprep.subr.mxu0 0.0
  %1433 = vmatpush1.msra.mxu0 %v776
  %1434 = vmatprep.subr.mxu0 0.0
  %1435 = vmatpush1.msra.mxu0 %v775
  %1436 = vmatprep.subr.mxu0 0.0
  %1437 = vmatpush1.msra.mxu0 %v774
  %1438 = vmatprep.subr.mxu0 0.0
  %1439 = vmatpush1.msra.mxu0 %v773
  %1440 = vmatprep.subr.mxu0 0.0
  %1441 = vmatpush2.msra.mxu0 0.0
  %1442 = vmatprep.subr.mxu0 0.0
  %1443 = vmatpush2.msra.mxu0 0.0
  %1444 = vmatprep.subr.mxu0 0.0
  %1445 = vmatpush2.msra.mxu0 0.0
  %1446 = vmatprep.subr.mxu0 0.0
  %1447 = vmatpush2.msra.mxu0 0.0
  %1448 = vmatprep.subr.mxu0 0.0
  %1449 = vmatpush2.msra.mxu0 0.0
  %1450 = vmatprep.subr.mxu0 0.0
  %1451 = vmatpush2.msra.mxu0 0.0
  %1452 = vmatprep.subr.mxu0 0.0
  %1453 = vmatpush2.msra.mxu0 0.0
  %1454 = vmatprep.subr.mxu0 0.0
  %1455 = vmatpush2.msra.mxu0 0.0
  %1456 = vmatprep.subr.mxu0 0.0
  %1457 = vmatpush2.msra.mxu0 0.0
  %1458 = vmatprep.subr.mxu0 0.0
  %1459 = vmatpush2.msra.mxu0 0.0
  %1460 = vmatprep.subr.mxu0 0.0
  %1461 = vmatpush2.msra.mxu0 0.0
  %1462 = vmatprep.subr.mxu0 0.0
  %1463 = vmatpush2.msra.mxu0 0.0
  %1464 = vmatprep.subr.mxu0 0.0
  %1465 = vmatpush2.msra.mxu0 0.0
  %1466 = vmatprep.subr.mxu0 0.0
  %1467 = vmatpush2.msra.mxu0 0.0
  %1468 = vmatprep.subr.mxu0 0.0
  %1469 = vmatpush2.msra.mxu0 0.0
  %1470 = vmatprep.subr.mxu0 0.0
  %1471 = vmatpush2.msra.mxu0 0.0
  %1472 = vmatprep.mubr.f32.mxu0 0.0
  %1473 = vmatmul.mubr.f32.gmra.mxu0 %v1403
  %v1474 = vpop.f32.mrf.mxu0
  %v1475 = vadd.f32 0.0, %v1474
  %v1476 = vpop.f32.mrf.mxu0
  %1477 = vmatprep.mubr.f32.mxu0 0.0
  %1478 = vmatmul.mubr.f32.gmra.mxu0 %v1406
  %v1479 = vpop.f32.mrf.mxu0
  %v1480 = vadd.f32 0.0, %v1479
  %v1481 = vpop.f32.mrf.mxu0
  %1482 = vdwg.mxu0
  %1483 = vmatprep.subr.mxu0 0.0
  %1484 = vmatpush1.msra.mxu0 0.0
  %1485 = vmatprep.subr.mxu0 0.0
  %1486 = vmatpush1.msra.mxu0 0.0
  %1487 = vmatprep.subr.mxu0 0.0
  %1488 = vmatpush1.msra.mxu0 0.0
  %1489 = vmatprep.subr.mxu0 0.0
  %1490 = vmatpush1.msra.mxu0 0.0
  %1491 = vmatprep.subr.mxu0 0.0
  %1492 = vmatpush1.msra.mxu0 0.0
  %1493 = vmatprep.subr.mxu0 0.0
  %1494 = vmatpush1.msra.mxu0 0.0
  %1495 = vmatprep.subr.mxu0 0.0
  %1496 = vmatpush1.msra.mxu0 0.0
  %1497 = vmatprep.subr.mxu0 0.0
  %1498 = vmatpush1.msra.mxu0 0.0
  %1499 = vmatprep.subr.mxu0 0.0
  %1500 = vmatpush1.msra.mxu0 0.0
  %1501 = vmatprep.subr.mxu0 0.0
  %1502 = vmatpush1.msra.mxu0 0.0
  %1503 = vmatprep.subr.mxu0 0.0
  %1504 = vmatpush1.msra.mxu0 0.0
  %1505 = vmatprep.subr.mxu0 0.0
  %1506 = vmatpush1.msra.mxu0 0.0
  %1507 = vmatprep.subr.mxu0 0.0
  %1508 = vmatpush1.msra.mxu0 0.0
  %1509 = vmatprep.subr.mxu0 0.0
  %1510 = vmatpush1.msra.mxu0 0.0
  %1511 = vmatprep.subr.mxu0 0.0
  %1512 = vmatpush1.msra.mxu0 %v1480
  %1513 = vmatprep.subr.mxu0 0.0
  %1514 = vmatpush1.msra.mxu0 %v1475
  %1515 = vmatprep.subr.mxu0 0.0
  %1516 = vmatpush2.msra.mxu0 0.0
  %1517 = vmatprep.subr.mxu0 0.0
  %1518 = vmatpush2.msra.mxu0 0.0
  %1519 = vmatprep.subr.mxu0 0.0
  %1520 = vmatpush2.msra.mxu0 0.0
  %1521 = vmatprep.subr.mxu0 0.0
  %1522 = vmatpush2.msra.mxu0 0.0
  %1523 = vmatprep.subr.mxu0 0.0
  %1524 = vmatpush2.msra.mxu0 0.0
  %1525 = vmatprep.subr.mxu0 0.0
  %1526 = vmatpush2.msra.mxu0 0.0
  %1527 = vmatprep.subr.mxu0 0.0
  %1528 = vmatpush2.msra.mxu0 0.0
  %1529 = vmatprep.subr.mxu0 0.0
  %1530 = vmatpush2.msra.mxu0 0.0
  %1531 = vmatprep.subr.mxu0 0.0
  %1532 = vmatpush2.msra.mxu0 0.0
  %1533 = vmatprep.subr.mxu0 0.0
  %1534 = vmatpush2.msra.mxu0 0.0
  %1535 = vmatprep.subr.mxu0 0.0
  %1536 = vmatpush2.msra.mxu0 0.0
  %1537 = vmatprep.subr.mxu0 0.0
  %1538 = vmatpush2.msra.mxu0 0.0
  %1539 = vmatprep.subr.mxu0 0.0
  %1540 = vmatpush2.msra.mxu0 0.0
  %1541 = vmatprep.subr.mxu0 0.0
  %1542 = vmatpush2.msra.mxu0 0.0
  %1543 = vmatprep.subr.mxu0 0.0
  %1544 = vmatpush2.msra.mxu0 0.0
  %1545 = vmatprep.subr.mxu0 0.0
  %1546 = vmatpush2.msra.mxu0 0.0
  %1547 = vmatprep.mubr.f32.mxu0 0.0
  %1548 = vmatmul.mubr.f32.gmra.mxu0 %v867
  %v1549 = vpop.f32.mrf.mxu0
  %v1550 = vadd.f32 0.0, %v1549
  %v1551 = vpop.f32.mrf.mxu0
  %1552 = vdwg.mxu0
  %v1553 = vmul.f32 %v936, %v1087
  %v1554 = vsub.f32 %v1550, %v1553
  %v1555 = vmul.f32 %v936, 2.0
  %v1556 = vmul.f32 %v1555, %v1087
  %v1557 = vadd.f32 %v1556, 0.0001
  %v1558 = vmul.f32 %v1554, 2.0
  %v1559 = vadd.f32 %v1558, 0.0009
  %v1560 = vmul.f32 %v1557, %v1559
  %v1561 = vadd.f32 %v1243, %v1398
  %v1562 = vadd.f32 %v1561, 0.0001
  %v1563 = vadd.f32 %v1244, %v1399
  %v1564 = vadd.f32 %v1563, 0.0009
  %v1565 = vmul.f32 %v1562, %v1564
  %v1566 = vrcp.pop %v1565
  %v1567 = vmul.f32 %v1560, %v1566
  %vm1568 = vcmask 291840
  %v1569 = vsel %vm1568, %v1567, 0.0
  %1570 = vadd.xlane.f32.xlu0 %v1569
  %v1571 = vpop.xlane.xlu0 %1570
  %vm1572 = vcmask 1045504
  %v1573 = vsel %vm1572, %v1571, 0.0
  %v1574 = vrot.slane %v1573, 4
  %v1575 = vadd.f32 %v1573, %v1574
  %v1576 = vrot.slane %v1575, 2
  %v1577 = vadd.f32 %v1575, %v1576
  %v1578 = vrot.slane %v1577, 1
  %v1579 = vadd.f32 %v1577, %v1578
  %v1580 = vld [vmem:[%s12] sm:$0xff]
  %v1581 = vld [vmem:[%s12 + $0x8] sm:$0xff]
  %v1582 = vld [vmem:[%s15] sm:$0xff]
  %v1583 = vld [vmem:[%s15 + $0x8] sm:$0xff]
  %v1584 = vld [vmem:[%s15 + $0x10] sm:$0xff]
  %v1585 = vld [vmem:[%s15 + $0x18] sm:$0xff]
  %v1586 = vld [vmem:[%s15 + $0x20] sm:$0xff]
  %v1587 = vld [vmem:[%s15 + $0x28] sm:$0xff]
  %v1588 = vld [vmem:[%s15 + $0x30] sm:$0xff]
  %v1589 = vld [vmem:[%s15 + $0x38] sm:$0xff]
  %v1590 = vld [vmem:[%s15 + $0x40] sm:$0xff]
  %v1591 = vld [vmem:[%s15 + $0x48] sm:$0xff]
  %v1592 = vld [vmem:[%s15 + $0x50] sm:$0xff]
  %v1593 = vld [vmem:[%s15 + $0x58] sm:$0xff]
  %v1595 = vsel %vm82, %v67, 0
  %v1598 = vsel %vm82, %v68, 0
  %1600 = vmatprep.subr.mxu0 0.0
  %1601 = vmatpush1.msra.mxu0 0.0
  %1602 = vmatprep.subr.mxu0 0.0
  %1603 = vmatpush1.msra.mxu0 0.0
  %1604 = vmatprep.subr.mxu0 0.0
  %1605 = vmatpush1.msra.mxu0 0.0
  %1606 = vmatprep.subr.mxu0 0.0
  %1607 = vmatpush1.msra.mxu0 0.0
  %1608 = vmatprep.subr.mxu0 0.0
  %1609 = vmatpush1.msra.mxu0 %v1593
  %1610 = vmatprep.subr.mxu0 0.0
  %1611 = vmatpush1.msra.mxu0 %v1592
  %1612 = vmatprep.subr.mxu0 0.0
  %1613 = vmatpush1.msra.mxu0 %v1591
  %1614 = vmatprep.subr.mxu0 0.0
  %1615 = vmatpush1.msra.mxu0 %v1590
  %1616 = vmatprep.subr.mxu0 0.0
  %1617 = vmatpush1.msra.mxu0 %v1589
  %1618 = vmatprep.subr.mxu0 0.0
  %1619 = vmatpush1.msra.mxu0 %v1588
  %1620 = vmatprep.subr.mxu0 0.0
  %1621 = vmatpush1.msra.mxu0 %v1587
  %1622 = vmatprep.subr.mxu0 0.0
  %1623 = vmatpush1.msra.mxu0 %v1586
  %1624 = vmatprep.subr.mxu0 0.0
  %1625 = vmatpush1.msra.mxu0 %v1585
  %1626 = vmatprep.subr.mxu0 0.0
  %1627 = vmatpush1.msra.mxu0 %v1584
  %1628 = vmatprep.subr.mxu0 0.0
  %1629 = vmatpush1.msra.mxu0 %v1583
  %1630 = vmatprep.subr.mxu0 0.0
  %1631 = vmatpush1.msra.mxu0 %v1582
  %1632 = vmatprep.subr.mxu0 0.0
  %1633 = vmatpush2.msra.mxu0 0.0
  %1634 = vmatprep.subr.mxu0 0.0
  %1635 = vmatpush2.msra.mxu0 0.0
  %1636 = vmatprep.subr.mxu0 0.0
  %1637 = vmatpush2.msra.mxu0 0.0
  %1638 = vmatprep.subr.mxu0 0.0
  %1639 = vmatpush2.msra.mxu0 0.0
  %1640 = vmatprep.subr.mxu0 0.0
  %1641 = vmatpush2.msra.mxu0 0.0
  %1642 = vmatprep.subr.mxu0 0.0
  %1643 = vmatpush2.msra.mxu0 0.0
  %1644 = vmatprep.subr.mxu0 0.0
  %1645 = vmatpush2.msra.mxu0 0.0
  %1646 = vmatprep.subr.mxu0 0.0
  %1647 = vmatpush2.msra.mxu0 0.0
  %1648 = vmatprep.subr.mxu0 0.0
  %1649 = vmatpush2.msra.mxu0 0.0
  %1650 = vmatprep.subr.mxu0 0.0
  %1651 = vmatpush2.msra.mxu0 0.0
  %1652 = vmatprep.subr.mxu0 0.0
  %1653 = vmatpush2.msra.mxu0 0.0
  %1654 = vmatprep.subr.mxu0 0.0
  %1655 = vmatpush2.msra.mxu0 0.0
  %1656 = vmatprep.subr.mxu0 0.0
  %1657 = vmatpush2.msra.mxu0 0.0
  %1658 = vmatprep.subr.mxu0 0.0
  %1659 = vmatpush2.msra.mxu0 0.0
  %1660 = vmatprep.subr.mxu0 0.0
  %1661 = vmatpush2.msra.mxu0 0.0
  %1662 = vmatprep.subr.mxu0 0.0
  %1663 = vmatpush2.msra.mxu0 0.0
  %1664 = vmatprep.mubr.f32.mxu0 0.0
  %1665 = vmatmul.mubr.f32.gmra.mxu0 %v1595
  %v1666 = vpop.f32.mrf.mxu0
  %v1667 = vadd.f32 0.0, %v1666
  %v1668 = vpop.f32.mrf.mxu0
  %1669 = vmatprep.mubr.f32.mxu0 0.0
  %1670 = vmatmul.mubr.f32.gmra.mxu0 %v1598
  %v1671 = vpop.f32.mrf.mxu0
  %v1672 = vadd.f32 0.0, %v1671
  %v1673 = vpop.f32.mrf.mxu0
  %1674 = vdwg.mxu0
  %v1676 = vsel %vm164, %v1580, 0
  %v1679 = vsel %vm164, %v1581, 0
  %1681 = vmatprep.subr.mxu0 0.0
  %1682 = vmatpush1.msra.mxu0 0.0
  %1683 = vmatprep.subr.mxu0 0.0
  %1684 = vmatpush1.msra.mxu0 0.0
  %1685 = vmatprep.subr.mxu0 0.0
  %1686 = vmatpush1.msra.mxu0 0.0
  %1687 = vmatprep.subr.mxu0 0.0
  %1688 = vmatpush1.msra.mxu0 0.0
  %1689 = vmatprep.subr.mxu0 0.0
  %1690 = vmatpush1.msra.mxu0 0.0
  %1691 = vmatprep.subr.mxu0 0.0
  %1692 = vmatpush1.msra.mxu0 0.0
  %1693 = vmatprep.subr.mxu0 0.0
  %1694 = vmatpush1.msra.mxu0 0.0
  %1695 = vmatprep.subr.mxu0 0.0
  %1696 = vmatpush1.msra.mxu0 0.0
  %1697 = vmatprep.subr.mxu0 0.0
  %1698 = vmatpush1.msra.mxu0 0.0
  %1699 = vmatprep.subr.mxu0 0.0
  %1700 = vmatpush1.msra.mxu0 0.0
  %1701 = vmatprep.subr.mxu0 0.0
  %1702 = vmatpush1.msra.mxu0 0.0
  %1703 = vmatprep.subr.mxu0 0.0
  %1704 = vmatpush1.msra.mxu0 0.0
  %1705 = vmatprep.subr.mxu0 0.0
  %1706 = vmatpush1.msra.mxu0 0.0
  %1707 = vmatprep.subr.mxu0 0.0
  %1708 = vmatpush1.msra.mxu0 0.0
  %1709 = vmatprep.subr.mxu0 0.0
  %1710 = vmatpush1.msra.mxu0 %v1672
  %1711 = vmatprep.subr.mxu0 0.0
  %1712 = vmatpush1.msra.mxu0 %v1667
  %1713 = vmatprep.subr.mxu0 0.0
  %1714 = vmatpush2.msra.mxu0 0.0
  %1715 = vmatprep.subr.mxu0 0.0
  %1716 = vmatpush2.msra.mxu0 0.0
  %1717 = vmatprep.subr.mxu0 0.0
  %1718 = vmatpush2.msra.mxu0 0.0
  %1719 = vmatprep.subr.mxu0 0.0
  %1720 = vmatpush2.msra.mxu0 0.0
  %1721 = vmatprep.subr.mxu0 0.0
  %1722 = vmatpush2.msra.mxu0 0.0
  %1723 = vmatprep.subr.mxu0 0.0
  %1724 = vmatpush2.msra.mxu0 0.0
  %1725 = vmatprep.subr.mxu0 0.0
  %1726 = vmatpush2.msra.mxu0 0.0
  %1727 = vmatprep.subr.mxu0 0.0
  %1728 = vmatpush2.msra.mxu0 0.0
  %1729 = vmatprep.subr.mxu0 0.0
  %1730 = vmatpush2.msra.mxu0 0.0
  %1731 = vmatprep.subr.mxu0 0.0
  %1732 = vmatpush2.msra.mxu0 0.0
  %1733 = vmatprep.subr.mxu0 0.0
  %1734 = vmatpush2.msra.mxu0 0.0
  %1735 = vmatprep.subr.mxu0 0.0
  %1736 = vmatpush2.msra.mxu0 0.0
  %1737 = vmatprep.subr.mxu0 0.0
  %1738 = vmatpush2.msra.mxu0 0.0
  %1739 = vmatprep.subr.mxu0 0.0
  %1740 = vmatpush2.msra.mxu0 0.0
  %1741 = vmatprep.subr.mxu0 0.0
  %1742 = vmatpush2.msra.mxu0 0.0
  %1743 = vmatprep.subr.mxu0 0.0
  %1744 = vmatpush2.msra.mxu0 0.0
  %1745 = vmatprep.mubr.f32.mxu0 0.0
  %1746 = vmatmul.mubr.f32.gmra.mxu0 %v1676
  %v1747 = vpop.f32.mrf.mxu0
  %v1748 = vadd.f32 0.0, %v1747
  %v1749 = vpop.f32.mrf.mxu0
  %1750 = vmatprep.mubr.f32.mxu0 0.0
  %1751 = vmatmul.mubr.f32.gmra.mxu0 %v1679
  %v1752 = vpop.f32.mrf.mxu0
  %v1753 = vadd.f32 0.0, %v1752
  %v1754 = vpop.f32.mrf.mxu0
  %1755 = vdwg.mxu0
  %v1756 = vld [vmem:[%s13] sm:$0xff]
  %v1757 = vld [vmem:[%s13 + $0x8] sm:$0xff]
  %v1758 = vld [vmem:[%s14] sm:$0xff]
  %v1759 = vld [vmem:[%s14 + $0x8] sm:$0xff]
  %v1760 = vld [vmem:[%s14 + $0x10] sm:$0xff]
  %v1761 = vld [vmem:[%s14 + $0x18] sm:$0xff]
  %v1762 = vld [vmem:[%s14 + $0x20] sm:$0xff]
  %v1763 = vld [vmem:[%s14 + $0x28] sm:$0xff]
  %v1764 = vld [vmem:[%s14 + $0x30] sm:$0xff]
  %v1765 = vld [vmem:[%s14 + $0x38] sm:$0xff]
  %v1766 = vld [vmem:[%s14 + $0x40] sm:$0xff]
  %v1767 = vld [vmem:[%s14 + $0x48] sm:$0xff]
  %v1768 = vld [vmem:[%s14 + $0x50] sm:$0xff]
  %v1769 = vld [vmem:[%s14 + $0x58] sm:$0xff]
  %1770 = vmatprep.subr.mxu0 0.0
  %1771 = vmatpush1.msra.mxu0 0.0
  %1772 = vmatprep.subr.mxu0 0.0
  %1773 = vmatpush1.msra.mxu0 0.0
  %1774 = vmatprep.subr.mxu0 0.0
  %1775 = vmatpush1.msra.mxu0 0.0
  %1776 = vmatprep.subr.mxu0 0.0
  %1777 = vmatpush1.msra.mxu0 0.0
  %1778 = vmatprep.subr.mxu0 0.0
  %1779 = vmatpush1.msra.mxu0 %v1769
  %1780 = vmatprep.subr.mxu0 0.0
  %1781 = vmatpush1.msra.mxu0 %v1768
  %1782 = vmatprep.subr.mxu0 0.0
  %1783 = vmatpush1.msra.mxu0 %v1767
  %1784 = vmatprep.subr.mxu0 0.0
  %1785 = vmatpush1.msra.mxu0 %v1766
  %1786 = vmatprep.subr.mxu0 0.0
  %1787 = vmatpush1.msra.mxu0 %v1765
  %1788 = vmatprep.subr.mxu0 0.0
  %1789 = vmatpush1.msra.mxu0 %v1764
  %1790 = vmatprep.subr.mxu0 0.0
  %1791 = vmatpush1.msra.mxu0 %v1763
  %1792 = vmatprep.subr.mxu0 0.0
  %1793 = vmatpush1.msra.mxu0 %v1762
  %1794 = vmatprep.subr.mxu0 0.0
  %1795 = vmatpush1.msra.mxu0 %v1761
  %1796 = vmatprep.subr.mxu0 0.0
  %1797 = vmatpush1.msra.mxu0 %v1760
  %1798 = vmatprep.subr.mxu0 0.0
  %1799 = vmatpush1.msra.mxu0 %v1759
  %1800 = vmatprep.subr.mxu0 0.0
  %1801 = vmatpush1.msra.mxu0 %v1758
  %1802 = vmatprep.subr.mxu0 0.0
  %1803 = vmatpush2.msra.mxu0 0.0
  %1804 = vmatprep.subr.mxu0 0.0
  %1805 = vmatpush2.msra.mxu0 0.0
  %1806 = vmatprep.subr.mxu0 0.0
  %1807 = vmatpush2.msra.mxu0 0.0
  %1808 = vmatprep.subr.mxu0 0.0
  %1809 = vmatpush2.msra.mxu0 0.0
  %1810 = vmatprep.subr.mxu0 0.0
  %1811 = vmatpush2.msra.mxu0 0.0
  %1812 = vmatprep.subr.mxu0 0.0
  %1813 = vmatpush2.msra.mxu0 0.0
  %1814 = vmatprep.subr.mxu0 0.0
  %1815 = vmatpush2.msra.mxu0 0.0
  %1816 = vmatprep.subr.mxu0 0.0
  %1817 = vmatpush2.msra.mxu0 0.0
  %1818 = vmatprep.subr.mxu0 0.0
  %1819 = vmatpush2.msra.mxu0 0.0
  %1820 = vmatprep.subr.mxu0 0.0
  %1821 = vmatpush2.msra.mxu0 0.0
  %1822 = vmatprep.subr.mxu0 0.0
  %1823 = vmatpush2.msra.mxu0 0.0
  %1824 = vmatprep.subr.mxu0 0.0
  %1825 = vmatpush2.msra.mxu0 0.0
  %1826 = vmatprep.subr.mxu0 0.0
  %1827 = vmatpush2.msra.mxu0 0.0
  %1828 = vmatprep.subr.mxu0 0.0
  %1829 = vmatpush2.msra.mxu0 0.0
  %1830 = vmatprep.subr.mxu0 0.0
  %1831 = vmatpush2.msra.mxu0 0.0
  %1832 = vmatprep.subr.mxu0 0.0
  %1833 = vmatpush2.msra.mxu0 0.0
  %1834 = vmatprep.mubr.f32.mxu0 0.0
  %1835 = vmatmul.mubr.f32.gmra.mxu0 %v1595
  %v1836 = vpop.f32.mrf.mxu0
  %v1837 = vadd.f32 0.0, %v1836
  %v1838 = vpop.f32.mrf.mxu0
  %1839 = vmatprep.mubr.f32.mxu0 0.0
  %1840 = vmatmul.mubr.f32.gmra.mxu0 %v1598
  %v1841 = vpop.f32.mrf.mxu0
  %v1842 = vadd.f32 0.0, %v1841
  %v1843 = vpop.f32.mrf.mxu0
  %1844 = vdwg.mxu0
  %v1846 = vsel %vm164, %v1756, 0
  %v1849 = vsel %vm164, %v1757, 0
  %1851 = vmatprep.subr.mxu0 0.0
  %1852 = vmatpush1.msra.mxu0 0.0
  %1853 = vmatprep.subr.mxu0 0.0
  %1854 = vmatpush1.msra.mxu0 0.0
  %1855 = vmatprep.subr.mxu0 0.0
  %1856 = vmatpush1.msra.mxu0 0.0
  %1857 = vmatprep.subr.mxu0 0.0
  %1858 = vmatpush1.msra.mxu0 0.0
  %1859 = vmatprep.subr.mxu0 0.0
  %1860 = vmatpush1.msra.mxu0 0.0
  %1861 = vmatprep.subr.mxu0 0.0
  %1862 = vmatpush1.msra.mxu0 0.0
  %1863 = vmatprep.subr.mxu0 0.0
  %1864 = vmatpush1.msra.mxu0 0.0
  %1865 = vmatprep.subr.mxu0 0.0
  %1866 = vmatpush1.msra.mxu0 0.0
  %1867 = vmatprep.subr.mxu0 0.0
  %1868 = vmatpush1.msra.mxu0 0.0
  %1869 = vmatprep.subr.mxu0 0.0
  %1870 = vmatpush1.msra.mxu0 0.0
  %1871 = vmatprep.subr.mxu0 0.0
  %1872 = vmatpush1.msra.mxu0 0.0
  %1873 = vmatprep.subr.mxu0 0.0
  %1874 = vmatpush1.msra.mxu0 0.0
  %1875 = vmatprep.subr.mxu0 0.0
  %1876 = vmatpush1.msra.mxu0 0.0
  %1877 = vmatprep.subr.mxu0 0.0
  %1878 = vmatpush1.msra.mxu0 0.0
  %1879 = vmatprep.subr.mxu0 0.0
  %1880 = vmatpush1.msra.mxu0 %v1842
  %1881 = vmatprep.subr.mxu0 0.0
  %1882 = vmatpush1.msra.mxu0 %v1837
  %1883 = vmatprep.subr.mxu0 0.0
  %1884 = vmatpush2.msra.mxu0 0.0
  %1885 = vmatprep.subr.mxu0 0.0
  %1886 = vmatpush2.msra.mxu0 0.0
  %1887 = vmatprep.subr.mxu0 0.0
  %1888 = vmatpush2.msra.mxu0 0.0
  %1889 = vmatprep.subr.mxu0 0.0
  %1890 = vmatpush2.msra.mxu0 0.0
  %1891 = vmatprep.subr.mxu0 0.0
  %1892 = vmatpush2.msra.mxu0 0.0
  %1893 = vmatprep.subr.mxu0 0.0
  %1894 = vmatpush2.msra.mxu0 0.0
  %1895 = vmatprep.subr.mxu0 0.0
  %1896 = vmatpush2.msra.mxu0 0.0
  %1897 = vmatprep.subr.mxu0 0.0
  %1898 = vmatpush2.msra.mxu0 0.0
  %1899 = vmatprep.subr.mxu0 0.0
  %1900 = vmatpush2.msra.mxu0 0.0
  %1901 = vmatprep.subr.mxu0 0.0
  %1902 = vmatpush2.msra.mxu0 0.0
  %1903 = vmatprep.subr.mxu0 0.0
  %1904 = vmatpush2.msra.mxu0 0.0
  %1905 = vmatprep.subr.mxu0 0.0
  %1906 = vmatpush2.msra.mxu0 0.0
  %1907 = vmatprep.subr.mxu0 0.0
  %1908 = vmatpush2.msra.mxu0 0.0
  %1909 = vmatprep.subr.mxu0 0.0
  %1910 = vmatpush2.msra.mxu0 0.0
  %1911 = vmatprep.subr.mxu0 0.0
  %1912 = vmatpush2.msra.mxu0 0.0
  %1913 = vmatprep.subr.mxu0 0.0
  %1914 = vmatpush2.msra.mxu0 0.0
  %1915 = vmatprep.mubr.f32.mxu0 0.0
  %1916 = vmatmul.mubr.f32.gmra.mxu0 %v1846
  %v1917 = vpop.f32.mrf.mxu0
  %v1918 = vadd.f32 0.0, %v1917
  %v1919 = vpop.f32.mrf.mxu0
  %1920 = vmatprep.mubr.f32.mxu0 0.0
  %1921 = vmatmul.mubr.f32.gmra.mxu0 %v1849
  %v1922 = vpop.f32.mrf.mxu0
  %v1923 = vadd.f32 0.0, %v1922
  %v1924 = vpop.f32.mrf.mxu0
  %1925 = vdwg.mxu0
  %v1926 = vand.u32 2147483647, %v1748
  %v1927 = vand.u32 2147483647, %v1753
  %v1928 = vand.u32 2147483647, %v1918
  %v1929 = vand.u32 2147483647, %v1923
  %v1930 = vadd.f32 %v1926, %v1928
  %v1931 = vadd.f32 %v1927, %v1929
  %v1932 = vsel %vm82, %v1930, 0.0
  %1933 = vadd.xlane.f32.xlu0 %v1932
  %v1934 = vpop.xlane.xlu0 %1933
  %v1935 = vsel %vm82, %v1931, 0.0
  %1936 = vadd.xlane.f32.xlu0 %v1935
  %v1937 = vpop.xlane.xlu0 %1936
  %v1938 = vadd.f32 %v1934, %v1937
  %v1939 = vrot.slane %v1938, 4
  %v1940 = vadd.f32 %v1938, %v1939
  %v1941 = vrot.slane %v1940, 2
  %v1942 = vadd.f32 %v1940, %v1941
  %v1943 = vrot.slane %v1942, 1
  %v1944 = vadd.f32 %v1942, %v1943
  %v1945 = vlaneseq
  %v1946 = vand.u32 %v1945, 127
  %vm1947 = vcmp.eq.s32.totalorder %v1946, 0
  %v1948 = vsel %vm1947, %v771, 0.0
  %vm1949 = vcmp.eq.s32.totalorder %v1946, 1
  %v1950 = vsel %vm1949, %v720, 0.0
  %v1951 = vadd.f32 %v1948, %v1950
  %vm1952 = vcmp.eq.s32.totalorder %v1946, 2
  %v1953 = vsel %vm1952, %v756, 0.0
  %v1954 = vadd.f32 %v1951, %v1953
  %vm1955 = vcmp.eq.s32.totalorder %v1946, 3
  %v1956 = vsel %vm1955, %v1579, 0.0
  %v1957 = vadd.f32 %v1954, %v1956
  %vm1958 = vcmp.eq.s32.totalorder %v1946, 4
  %v1959 = vsel %vm1958, %v1944, 0.0
  %v1960 = vadd.f32 %v1957, %v1959
  %1961 = vst [vmem:[%s16] sm:$0x1] %v1960
  // Predicated region
  $region66: #{cfdn_loss.1} parent=0 // pred_check
    _
  $region67: #{cfdn_loss.1} parent=0 // pred_check_branch
    %1963 = sbr.rel (0) target = $region69
  $region68: #{cfdn_loss.1} parent=0 // pred_region
    _
  $region69: #{cfdn_loss.1} parent=0 // pred_fallthru
    _
  // Predicated region
  $region70: #{cfdn_loss.1} parent=0 // pred_check
    _
  $region71: #{cfdn_loss.1} parent=0 // pred_check_branch
    %1965 = sbr.rel (0) target = $region73
  $region72: #{cfdn_loss.1} parent=0 // pred_region
    _
  $region73: #{cfdn_loss.1} parent=0 // pred_fallthru
    _

</llo_original>
